<compile_context>
chip_gen: v6e
topology: v6e:2x2x1
jax: 0.10.0
libtpu: 0.0.40
codegen_flags: <defaults>
</compile_context>

<pallas_src>
import functools
import math

import jax
import jax.numpy as jnp
from jax.experimental import pallas as pl
from jax.experimental.pallas import tpu as pltpu


def _silu(x):
    return x * jax.nn.sigmoid(x)


def _device_kind():
    try:
        return jax.devices()[0].device_kind.lower()
    except Exception:
        return ""


def _equivariant_update_kernel(
    ids_ref,       # [8, tE] int32: sublane 0 = row ids, sublane 1 = col ids
    eattr_t_ref,   # [edges_in_d, tE] f32 edge attrs (zeros on padded edges)
    cdm_t_ref,     # [8, tE]  f32: rows 0..2 = (coord_diff * edge_mask).T
    node_idx_ref,  # [n_pad, 1] int32 node indices 0..n_pad-1 (const)
    p_row_t_ref,   # [H, n_pad] bf16 = (h @ w1_row).T
    p_col_t_ref,   # [H, n_pad] bf16 = (h @ w1_col).T
    w1e_t_ref,     # [H, edges_in_d] f32 (edge-attr weights, transposed)
    b1_ref,        # [H, 1] f32
    w2_t_ref,      # [H, H] bf16 (= w2.T)
    b2_ref,        # [H, 1] f32
    w3_ref,        # [H, 1] f32 (final hidden->1 projection)
    out_ref,       # [8, n_pad] f32 resident accumulator (rows 0..2 = agg.T)
    *, edges_in_d, use_tanh, coords_range,
):
    @pl.when(pl.program_id(1) == 0)
    def _():
        out_ref[...] = jnp.zeros_like(out_ref)

    row_ids = ids_ref[0:1, :]                                # [1, tE]
    col_ids = ids_ref[1:2, :]                                # [1, tE]
    node_idx = node_idx_ref[...]                             # [n_pad, 1]

    # One-hot node membership, node-major [n_pad, tE].  Values are 0/1 so the
    # bf16 cast is exact; padded edges carry id == n_pad -> all-zero columns.
    oh_row = (node_idx == row_ids).astype(jnp.bfloat16)      # [n_pad, tE]
    oh_col = (node_idx == col_ids).astype(jnp.bfloat16)      # [n_pad, tE]

    # Layer 1 (transposed): gather h[row]/h[col] projections through the MXU.
    pre1 = (jnp.dot(p_row_t_ref[...], oh_row,
                    preferred_element_type=jnp.float32)
            + jnp.dot(p_col_t_ref[...], oh_col,
                      preferred_element_type=jnp.float32)
            + b1_ref[...])                                    # [H, tE]
    eattr_t = eattr_t_ref[...]
    if edges_in_d == 1:
        # K=1 "matmul" is an outer-product broadcast -> keep it on the VPU.
        pre1 = pre1 + w1e_t_ref[...] * eattr_t
    else:
        pre1 = pre1 + jnp.dot(w1e_t_ref[...].astype(jnp.bfloat16),
                              eattr_t.astype(jnp.bfloat16),
                              preferred_element_type=jnp.float32)
    h1 = _silu(pre1)                                          # [H, tE] f32

    h2 = _silu(jnp.dot(w2_t_ref[...], h1.astype(jnp.bfloat16),
                       preferred_element_type=jnp.float32)
               + b2_ref[...])                                 # [H, tE] f32

    # hidden -> 1 projection: VPU multiply + sublane reduce -> lane-major row.
    s = jnp.sum(h2 * w3_ref[...], axis=0, keepdims=True)      # [1, tE]
    if use_tanh:
        s = jnp.tanh(s) * coords_range

    # Scale the coord slab once (O(tE)) instead of scaling the one-hot.
    cdm_scaled = (cdm_t_ref[...] * s).astype(jnp.bfloat16)    # [8, tE]

    # Scatter-add, contracting the edge (lane) axis of both operands
    # (same pattern as q @ k^T) -> lane-dense [8, n_pad] accumulate.
    out_ref[...] += jax.lax.dot_general(
        cdm_scaled, oh_row,
        dimension_numbers=(((1,), (1,)), ((), ())),
        preferred_element_type=jnp.float32)


def equivariant_update(h, coord, edge_index, coord_diff, edge_attr,
                       node_mask, edge_mask, params, *,
                       normalization_factor, aggregation_method,
                       use_tanh=False, coords_range=10.0,
                       edge_tile=2048, num_shards=None):
    row, col = edge_index
    n_nodes, hidden = h.shape
    n_edges = row.shape[0]

    w1, b1, w2, b2, w3 = params
    w1 = w1.astype(jnp.float32)
    edges_in_d = w1.shape[0] - 2 * hidden

    # ---- per-generation settings -------------------------------------------
    kind = _device_kind()
    is_v7 = "v7" in kind
    if num_shards is None:
        num_shards = 2 if is_v7 else 1          # megacore only on v7x
    vmem_limit = (48 if is_v7 else 100) * 1024 * 1024

    # ---- node padding to full 128-lane blocks -------------------------------
    n_pad = 128 * max(1, pl.cdiv(n_nodes, 128))

    # Per-node projections of the first layer (small, resident in VMEM),
    # transposed to hidden-major and cast to bf16 for the MXU.
    hf = h.astype(jnp.float32)
    p_row = hf @ w1[:hidden]                                  # [N, H]
    p_col = hf @ w1[hidden:2 * hidden]                        # [N, H]
    p_row_t = jnp.zeros((hidden, n_pad), jnp.bfloat16)
    p_row_t = p_row_t.at[:, :n_nodes].set(p_row.T.astype(jnp.bfloat16))
    p_col_t = jnp.zeros((hidden, n_pad), jnp.bfloat16)
    p_col_t = p_col_t.at[:, :n_nodes].set(p_col.T.astype(jnp.bfloat16))

    if edges_in_d > 0:
        assert edge_attr is not None, "edge_attr required when edges_in_d > 0"
        w1e_t = w1[2 * hidden:].T                             # [H, edges_in_d]
        ea = edge_attr.astype(jnp.float32)
    else:
        edges_in_d = 1
        w1e_t = jnp.zeros((hidden, 1), jnp.float32)
        ea = jnp.zeros((n_edges, 1), jnp.float32)

    b1c = b1.reshape(hidden, 1).astype(jnp.float32)
    b2c = b2.reshape(hidden, 1).astype(jnp.float32)
    w2_t = w2.T.astype(jnp.bfloat16)                          # [H, H]
    w3c = w3.reshape(hidden, 1).astype(jnp.float32)
    node_idx = jnp.arange(n_pad, dtype=jnp.int32).reshape(n_pad, 1)

    # Fold the edge mask into coord_diff (trans = cd * s * mask commutes).
    cdm = coord_diff.astype(jnp.float32)
    if edge_mask is not None:
        cdm = cdm * edge_mask.astype(jnp.float32)

    # ---- edge tiling: lane-aligned, VMEM-aware -------------------------------
    per_shard = pl.cdiv(n_edges, num_shards)
    # ~3 live [n_pad, tile] bf16 one-hot-sized intermediates dominate VMEM.
    onehot_budget = vmem_limit // 2
    cap_by_vmem = max(1, onehot_budget // (6 * n_pad * 128))
    tile = 128 * max(1, min(edge_tile // 128,
                            pl.cdiv(per_shard, 128),
                            cap_by_vmem))
    chunks = pl.cdiv(per_shard, tile)
    e_pad = num_shards * chunks * tile

    # Lane-dense (edge = lane) input streams; padded edges get id == n_pad so
    # their one-hot columns are all-zero everywhere.
    ids_t = jnp.full((8, e_pad), n_pad, jnp.int32)
    ids_t = ids_t.at[0, :n_edges].set(row.astype(jnp.int32))
    ids_t = ids_t.at[1, :n_edges].set(col.astype(jnp.int32))
    ea_t = jnp.zeros((edges_in_d, e_pad), jnp.float32).at[:, :n_edges].set(ea.T)
    cdm_t = jnp.zeros((8, e_pad), jnp.float32).at[:3, :n_edges].set(cdm.T)

    kernel = functools.partial(
        _equivariant_update_kernel,
        edges_in_d=edges_in_d, use_tanh=use_tanh, coords_range=coords_range)

    edge_map_t = lambda s, i: (0, s * chunks + i)
    const_map = lambda s, i: (0, 0)

    flops = int(2 * e_pad * (2 * n_pad * hidden + hidden * hidden + 8 * n_pad))
    transcendentals = int(e_pad * (2 * hidden + 1))
    bytes_accessed = int(e_pad * (8 + 8 + edges_in_d) * 4
                         + 2 * n_pad * hidden * 2
                         + num_shards * 8 * n_pad * 4)
    cost = pl.CostEstimate(flops=flops, transcendentals=transcendentals,
                           bytes_accessed=bytes_accessed)

    def _call(single_buffer_consts):
        if single_buffer_consts:
            def cspec(shape):
                return pl.BlockSpec(shape, const_map,
                                    pipeline_mode=pl.Buffered(1))
        else:
            def cspec(shape):
                return pl.BlockSpec(shape, const_map)
        return pl.pallas_call(
            kernel,
            out_shape=jax.ShapeDtypeStruct((num_shards, 8, n_pad), jnp.float32),
            grid_spec=pltpu.PrefetchScalarGridSpec(
                num_scalar_prefetch=0,
                grid=(num_shards, chunks),
                in_specs=[
                    pl.BlockSpec((8, tile), edge_map_t),            # ids_t
                    pl.BlockSpec((edges_in_d, tile), edge_map_t),   # ea_t
                    pl.BlockSpec((8, tile), edge_map_t),            # cdm_t
                    cspec((n_pad, 1)),                              # node_idx
                    cspec((hidden, n_pad)),                         # p_row_t
                    cspec((hidden, n_pad)),                         # p_col_t
                    cspec((hidden, edges_in_d)),                    # w1e_t
                    cspec((hidden, 1)),                             # b1
                    cspec((hidden, hidden)),                        # w2_t
                    cspec((hidden, 1)),                             # b2
                    cspec((hidden, 1)),                             # w3
                ],
                out_specs=pl.BlockSpec((None, 8, n_pad),
                                       lambda s, i: (s, 0, 0)),
            ),
            compiler_params=pltpu.CompilerParams(
                dimension_semantics=("parallel", "arbitrary"),
                vmem_limit_bytes=vmem_limit),
            cost_estimate=cost,
        )(ids_t, ea_t, cdm_t, node_idx, p_row_t, p_col_t, w1e_t, b1c,
          w2_t, b2c, w3c)

    try:
        out = _call(True)      # single-buffer the grid-invariant operands
    except Exception:
        out = _call(False)     # fallback: default double-buffering

    tot = jnp.sum(out, axis=0) if num_shards > 1 else out[0]
    agg = tot[:3, :n_nodes].T                                  # [N, 3]

    if aggregation_method == "sum":
        agg = agg / normalization_factor
    elif aggregation_method == "mean":
        # Histogram of `row` (matches the reference: masked edges counted).
        cnt = jnp.zeros((n_nodes,), jnp.float32).at[row].add(1.0)
        cnt = jnp.where(cnt == 0, 1.0, cnt)
        agg = agg / cnt[:, None]

    coord_out = coord.astype(jnp.float32) + agg
    if node_mask is not None:
        coord_out = coord_out * node_mask
    return coord_out


# ---------------------------------------------------------------------------
# Deterministic parameter init (mirrors the PyTorch __init__ shapes).
# ---------------------------------------------------------------------------
def init_params(key, hidden_nf, edges_in_d):
    d_in = 2 * hidden_nf + edges_in_d
    k1, k2, k3, k4, k5 = jax.random.split(key, 5)

    def lin_uniform(k, fan_in, shape):
        bound = 1.0 / math.sqrt(fan_in)
        return jax.random.uniform(k, shape, jnp.float32, -bound, bound)

    w1 = lin_uniform(k1, d_in, (d_in, hidden_nf))
    b1 = lin_uniform(k2, d_in, (hidden_nf,))
    w2 = lin_uniform(k3, hidden_nf, (hidden_nf, hidden_nf))
    b2 = lin_uniform(k4, hidden_nf, (hidden_nf,))
    # xavier_uniform_(gain=0.001), no bias, out_features = 1
    xb = 0.001 * math.sqrt(6.0 / (hidden_nf + 1))
    w3 = jax.random.uniform(k5, (hidden_nf, 1), jnp.float32, -xb, xb)
    return (w1, b1, w2, b2, w3)


def _reference(h, coord, edge_index, coord_diff, edge_attr, node_mask,
               edge_mask, params, *, normalization_factor,
               aggregation_method, use_tanh, coords_range):
    row, col = edge_index
    w1, b1, w2, b2, w3 = params
    x = jnp.concatenate([h[row], h[col], edge_attr], axis=1)
    h1 = _silu(x @ w1 + b1)
    h2 = _silu(h1 @ w2 + b2)
    s = h2 @ w3
    if use_tanh:
        s = jnp.tanh(s) * coords_range
    trans = coord_diff * s
    if edge_mask is not None:
        trans = trans * edge_mask
    n = coord.shape[0]
    agg = jax.ops.segment_sum(trans, row, num_segments=n)
    if aggregation_method == "sum":
        agg = agg / normalization_factor
    else:
        cnt = jax.ops.segment_sum(jnp.ones_like(trans), row, num_segments=n)
        cnt = jnp.where(cnt == 0, 1.0, cnt)
        agg = agg / cnt
    out = coord + agg
    if node_mask is not None:
        out = out * node_mask
    return out


if __name__ == "__main__":
    hidden_nf = 32
    edges_in_d = 1
    n_nodes = 8
    normalization_factor = 100.0
    use_tanh = True
    coords_range = 10.0

    key = jax.random.PRNGKey(0)
    kp, kh, kc, ka, km = jax.random.split(key, 5)
    params = init_params(kp, hidden_nf, edges_in_d)

    # Fully connected graph without self-loops: E = N*(N-1) = 56 edges.
    rows, cols = [], []
    for i in range(n_nodes):
        for j in range(n_nodes):
            if i != j:
                rows.append(i)
                cols.append(j)
    row = jnp.asarray(rows, jnp.int32)
    col = jnp.asarray(cols, jnp.int32)

    h = jax.random.normal(kh, (n_nodes, hidden_nf), jnp.float32)
    coord = jax.random.normal(kc, (n_nodes, 3), jnp.float32)
    coord_diff = coord[row] - coord[col]
    edge_attr = jax.random.normal(ka, (row.shape[0], edges_in_d), jnp.float32)
    node_mask = jnp.ones((n_nodes, 1), jnp.float32)
    edge_mask = (jax.random.uniform(km, (row.shape[0], 1)) > 0.2).astype(
        jnp.float32)

    ok = True
    for agg_method in ("sum", "mean"):
        out = equivariant_update(
            h, coord, (row, col), coord_diff, edge_attr, node_mask, edge_mask,
            params,
            normalization_factor=normalization_factor,
            aggregation_method=agg_method,
            use_tanh=use_tanh, coords_range=coords_range)
        out = jax.block_until_ready(out)

        ref = _reference(
            h, coord, (row, col), coord_diff, edge_attr, node_mask, edge_mask,
            params,
            normalization_factor=normalization_factor,
            aggregation_method=agg_method,
            use_tanh=use_tanh, coords_range=coords_range)

        assert out.shape == (n_nodes, 3)
        # bf16 MXU operands (hidden path) -> relaxed tolerance vs f32 reference.
        ok &= bool(jnp.allclose(out, ref, atol=5e-3, rtol=5e-3))

    assert ok
    print("KERNEL_OK")
</pallas_src>

<mosaic_0001>
module attributes {stable_mosaic.version = 11 : i64} {
  func.func @_equivariant_update_kernel(%arg0: i32, %arg1: i32, %arg2: memref<8x128xi32, #tpu.memory_space<vmem>>, %arg3: memref<1x128xf32, #tpu.memory_space<vmem>>, %arg4: memref<8x128xf32, #tpu.memory_space<vmem>>, %arg5: memref<128x1xi32, #tpu.memory_space<vmem>>, %arg6: memref<32x128xbf16, #tpu.memory_space<vmem>>, %arg7: memref<32x128xbf16, #tpu.memory_space<vmem>>, %arg8: memref<32x1xf32, #tpu.memory_space<vmem>>, %arg9: memref<32x1xf32, #tpu.memory_space<vmem>>, %arg10: memref<32x32xbf16, #tpu.memory_space<vmem>>, %arg11: memref<32x1xf32, #tpu.memory_space<vmem>>, %arg12: memref<32x1xf32, #tpu.memory_space<vmem>>, %arg13: memref<1x8x128xf32, #tpu.memory_space<vmem>>) attributes {dimension_semantics = [#tpu.dimension_semantics<parallel>, #tpu.dimension_semantics<arbitrary>], iteration_bounds = array<i64: 1, 1>, scalar_prefetch = 0 : i64, scratch_operands = 0 : i64, tpu.core_type = #tpu.core_type<tc>, window_params = [{transform_indices = @transform_0, window_bounds = array<i64: 8, 128>}, {transform_indices = @transform_1, window_bounds = array<i64: 1, 128>}, {transform_indices = @transform_2, window_bounds = array<i64: 8, 128>}, {pipeline_mode = #tpu.pipeline_mode<synchronous>, transform_indices = @transform_3, window_bounds = array<i64: 128, 1>}, {pipeline_mode = #tpu.pipeline_mode<synchronous>, transform_indices = @transform_4, window_bounds = array<i64: 32, 128>}, {pipeline_mode = #tpu.pipeline_mode<synchronous>, transform_indices = @transform_5, window_bounds = array<i64: 32, 128>}, {pipeline_mode = #tpu.pipeline_mode<synchronous>, transform_indices = @transform_6, window_bounds = array<i64: 32, 1>}, {pipeline_mode = #tpu.pipeline_mode<synchronous>, transform_indices = @transform_7, window_bounds = array<i64: 32, 1>}, {pipeline_mode = #tpu.pipeline_mode<synchronous>, transform_indices = @transform_8, window_bounds = array<i64: 32, 32>}, {pipeline_mode = #tpu.pipeline_mode<synchronous>, transform_indices = @transform_9, window_bounds = array<i64: 32, 1>}, {pipeline_mode = #tpu.pipeline_mode<synchronous>, transform_indices = @transform_10, window_bounds = array<i64: 32, 1>}, {transform_indices = @transform_11, window_bounds = array<i64: 1, 8, 128>}]} {
    %c0_i32 = arith.constant 0 : i32
    %0 = arith.cmpi eq, %arg1, %c0_i32 : i32
    %1 = arith.extui %0 : i1 to i32
    %c0_i32_0 = arith.constant 0 : i32
    %2 = arith.cmpi ne, %1, %c0_i32_0 : i32
    scf.if %2 {
      %cst_36 = arith.constant 0.000000e+00 : f32
      %69 = vector.broadcast %cst_36 : f32 to vector<8x128xf32>
      %c0_37 = arith.constant 0 : index
      %c0_38 = arith.constant 0 : index
      %c0_39 = arith.constant 0 : index
      %70 = vector.load %arg13[%c0_37, %c0_38, %c0_39] : memref<1x8x128xf32, #tpu.memory_space<vmem>>, vector<1x8x128xf32>
      %71 = vector.shape_cast %70 : vector<1x8x128xf32> to vector<8x128xf32>
      %72 = vector.shape_cast %69 : vector<8x128xf32> to vector<1x8x128xf32>
      tpu.vector_store %arg13[%c0_37, %c0_38, %c0_39], %72 {strides = array<i32>} : memref<1x8x128xf32, #tpu.memory_space<vmem>>, vector<1x8x128xf32>,
    } else {
    }
    %c0 = arith.constant 0 : index
    %c0_1 = arith.constant 0 : index
    %3 = vector.load %arg2[%c0, %c0_1] : memref<8x128xi32, #tpu.memory_space<vmem>>, vector<1x128xi32>
    %c1 = arith.constant 1 : index
    %c0_2 = arith.constant 0 : index
    %4 = vector.load %arg2[%c1, %c0_2] : memref<8x128xi32, #tpu.memory_space<vmem>>, vector<1x128xi32>
    %c0_3 = arith.constant 0 : index
    %c0_4 = arith.constant 0 : index
    %5 = vector.load %arg5[%c0_3, %c0_4] : memref<128x1xi32, #tpu.memory_space<vmem>>, vector<128x1xi32>
    %6 = vector.broadcast %5 : vector<128x1xi32> to vector<128x128xi32>
    %7 = vector.broadcast %3 : vector<1x128xi32> to vector<128x128xi32>
    %8 = arith.cmpi eq, %6, %7 : vector<128x128xi32>
    %9 = arith.extui %8 : vector<128x128xi1> to vector<128x128xi32>
    %10 = arith.sitofp %9 : vector<128x128xi32> to vector<128x128xf32>
    %11 = arith.truncf %10 : vector<128x128xf32> to vector<128x128xbf16>
    %12 = vector.broadcast %5 : vector<128x1xi32> to vector<128x128xi32>
    %13 = vector.broadcast %4 : vector<1x128xi32> to vector<128x128xi32>
    %14 = arith.cmpi eq, %12, %13 : vector<128x128xi32>
    %15 = arith.extui %14 : vector<128x128xi1> to vector<128x128xi32>
    %16 = arith.sitofp %15 : vector<128x128xi32> to vector<128x128xf32>
    %17 = arith.truncf %16 : vector<128x128xf32> to vector<128x128xbf16>
    %c0_5 = arith.constant 0 : index
    %c0_6 = arith.constant 0 : index
    %18 = vector.load %arg6[%c0_5, %c0_6] : memref<32x128xbf16, #tpu.memory_space<vmem>>, vector<32x128xbf16>
    %cst = arith.constant dense<0.000000e+00> : vector<32x128xf32>
    %19 = tpu.matmul %18, %11, %cst {dimension_numbers = #tpu.dot_dimension_numbers<[1], [0], [0], [1], [0, 0, 1, 1], [], []>} : vector<32x128xbf16>, vector<128x128xbf16>, vector<32x128xf32> -> vector<32x128xf32>
    %c0_7 = arith.constant 0 : index
    %c0_8 = arith.constant 0 : index
    %20 = vector.load %arg7[%c0_7, %c0_8] : memref<32x128xbf16, #tpu.memory_space<vmem>>, vector<32x128xbf16>
    %cst_9 = arith.constant dense<0.000000e+00> : vector<32x128xf32>
    %21 = tpu.matmul %20, %17, %cst_9 {dimension_numbers = #tpu.dot_dimension_numbers<[1], [0], [0], [1], [0, 0, 1, 1], [], []>} : vector<32x128xbf16>, vector<128x128xbf16>, vector<32x128xf32> -> vector<32x128xf32>
    %22 = arith.addf %19, %21 : vector<32x128xf32>
    %c0_10 = arith.constant 0 : index
    %c0_11 = arith.constant 0 : index
    %23 = vector.load %arg9[%c0_10, %c0_11] : memref<32x1xf32, #tpu.memory_space<vmem>>, vector<32x1xf32>
    %24 = vector.broadcast %23 : vector<32x1xf32> to vector<32x128xf32>
    %25 = arith.addf %22, %24 : vector<32x128xf32>
    %c0_12 = arith.constant 0 : index
    %c0_13 = arith.constant 0 : index
    %26 = vector.load %arg3[%c0_12, %c0_13] : memref<1x128xf32, #tpu.memory_space<vmem>>, vector<1x128xf32>
    %c0_14 = arith.constant 0 : index
    %c0_15 = arith.constant 0 : index
    %27 = vector.load %arg8[%c0_14, %c0_15] : memref<32x1xf32, #tpu.memory_space<vmem>>, vector<32x1xf32>
    %28 = vector.broadcast %27 : vector<32x1xf32> to vector<32x128xf32>
    %29 = vector.broadcast %26 : vector<1x128xf32> to vector<32x128xf32>
    %30 = arith.mulf %28, %29 : vector<32x128xf32>
    %31 = arith.addf %25, %30 : vector<32x128xf32>
    %32 = arith.negf %31 : vector<32x128xf32>
    %33 = math.exp %32 : vector<32x128xf32>
    %cst_16 = arith.constant 1.000000e+00 : f32
    %34 = vector.broadcast %cst_16 : f32 to vector<32x128xf32>
    %35 = arith.addf %34, %33 : vector<32x128xf32>
    %36 = arith.divf %34, %35 : vector<32x128xf32>
    %37 = arith.mulf %31, %36 : vector<32x128xf32>
    %c0_17 = arith.constant 0 : index
    %c0_18 = arith.constant 0 : index
    %38 = vector.load %arg10[%c0_17, %c0_18] : memref<32x32xbf16, #tpu.memory_space<vmem>>, vector<32x32xbf16>
    %39 = arith.truncf %37 : vector<32x128xf32> to vector<32x128xbf16>
    %cst_19 = arith.constant dense<0.000000e+00> : vector<32x128xf32>
    %40 = tpu.matmul %38, %39, %cst_19 {dimension_numbers = #tpu.dot_dimension_numbers<[1], [0], [0], [1], [0, 0, 1, 1], [], []>} : vector<32x32xbf16>, vector<32x128xbf16>, vector<32x128xf32> -> vector<32x128xf32>
    %c0_20 = arith.constant 0 : index
    %c0_21 = arith.constant 0 : index
    %41 = vector.load %arg11[%c0_20, %c0_21] : memref<32x1xf32, #tpu.memory_space<vmem>>, vector<32x1xf32>
    %42 = vector.broadcast %41 : vector<32x1xf32> to vector<32x128xf32>
    %43 = arith.addf %40, %42 : vector<32x128xf32>
    %44 = arith.negf %43 : vector<32x128xf32>
    %45 = math.exp %44 : vector<32x128xf32>
    %cst_22 = arith.constant 1.000000e+00 : f32
    %46 = vector.broadcast %cst_22 : f32 to vector<32x128xf32>
    %47 = arith.addf %46, %45 : vector<32x128xf32>
    %48 = arith.divf %46, %47 : vector<32x128xf32>
    %49 = arith.mulf %43, %48 : vector<32x128xf32>
    %c0_23 = arith.constant 0 : index
    %c0_24 = arith.constant 0 : index
    %50 = vector.load %arg12[%c0_23, %c0_24] : memref<32x1xf32, #tpu.memory_space<vmem>>, vector<32x1xf32>
    %51 = vector.broadcast %50 : vector<32x1xf32> to vector<32x128xf32>
    %52 = arith.mulf %49, %51 : vector<32x128xf32>
    %cst_25 = arith.constant dense<0.000000e+00> : vector<128xf32>
    %53 = vector.multi_reduction <add>, %52, %cst_25 [0] : vector<32x128xf32> to vector<128xf32>
    %54 = vector.shape_cast %53 : vector<128xf32> to vector<1x128xf32>
    %55 = math.tanh %54 : vector<1x128xf32>
    %cst_26 = arith.constant 1.000000e+01 : f32
    %56 = vector.broadcast %cst_26 : f32 to vector<1x128xf32>
    %57 = arith.mulf %55, %56 : vector<1x128xf32>
    %c0_27 = arith.constant 0 : index
    %c0_28 = arith.constant 0 : index
    %58 = vector.load %arg4[%c0_27, %c0_28] : memref<8x128xf32, #tpu.memory_space<vmem>>, vector<8x128xf32>
    %59 = vector.broadcast %57 : vector<1x128xf32> to vector<8x128xf32>
    %60 = arith.mulf %58, %59 : vector<8x128xf32>
    %61 = arith.truncf %60 : vector<8x128xf32> to vector<8x128xbf16>
    %c0_29 = arith.constant 0 : index
    %c0_30 = arith.constant 0 : index
    %c0_31 = arith.constant 0 : index
    %62 = vector.load %arg13[%c0_29, %c0_30, %c0_31] : memref<1x8x128xf32, #tpu.memory_space<vmem>>, vector<1x8x128xf32>
    %63 = vector.shape_cast %62 : vector<1x8x128xf32> to vector<8x128xf32>
    %cst_32 = arith.constant dense<0.000000e+00> : vector<8x128xf32>
    %64 = tpu.matmul %61, %11, %cst_32 {dimension_numbers = #tpu.dot_dimension_numbers<[1], [1], [0], [0], [0, 0, 1, 0], [], []>} : vector<8x128xbf16>, vector<128x128xbf16>, vector<8x128xf32> -> vector<8x128xf32>
    %65 = arith.addf %63, %64 : vector<8x128xf32>
    %c0_33 = arith.constant 0 : index
    %c0_34 = arith.constant 0 : index
    %c0_35 = arith.constant 0 : index
    %66 = vector.load %arg13[%c0_33, %c0_34, %c0_35] : memref<1x8x128xf32, #tpu.memory_space<vmem>>, vector<1x8x128xf32>
    %67 = vector.shape_cast %66 : vector<1x8x128xf32> to vector<8x128xf32>
    %68 = vector.shape_cast %65 : vector<8x128xf32> to vector<1x8x128xf32>
    tpu.vector_store %arg13[%c0_33, %c0_34, %c0_35], %68 {strides = array<i32>} : memref<1x8x128xf32, #tpu.memory_space<vmem>>, vector<1x8x128xf32>,
    return
  }
  func.func @transform_0(%arg0: i32, %arg1: i32) -> (i32, i32) {
    %c1_i32 = arith.constant 1 : i32
    %0 = arith.muli %arg0, %c1_i32 : i32
    %1 = arith.addi %0, %arg1 : i32
    %c0_i32 = arith.constant 0 : i32
    %c0_i32_0 = arith.constant 0 : i32
    return %c0_i32, %1 : i32, i32
  }
  func.func @transform_1(%arg0: i32, %arg1: i32) -> (i32, i32) {
    %c1_i32 = arith.constant 1 : i32
    %0 = arith.muli %arg0, %c1_i32 : i32
    %1 = arith.addi %0, %arg1 : i32
    %c0_i32 = arith.constant 0 : i32
    %c0_i32_0 = arith.constant 0 : i32
    return %c0_i32, %1 : i32, i32
  }
  func.func @transform_2(%arg0: i32, %arg1: i32) -> (i32, i32) {
    %c1_i32 = arith.constant 1 : i32
    %0 = arith.muli %arg0, %c1_i32 : i32
    %1 = arith.addi %0, %arg1 : i32
    %c0_i32 = arith.constant 0 : i32
    %c0_i32_0 = arith.constant 0 : i32
    return %c0_i32, %1 : i32, i32
  }
  func.func @transform_3(%arg0: i32, %arg1: i32) -> (i32, i32) {
    %c0_i32 = arith.constant 0 : i32
    %c0_i32_0 = arith.constant 0 : i32
    %c0_i32_1 = arith.constant 0 : i32
    return %c0_i32, %c0_i32_0 : i32, i32
  }
  func.func @transform_4(%arg0: i32, %arg1: i32) -> (i32, i32) {
    %c0_i32 = arith.constant 0 : i32
    %c0_i32_0 = arith.constant 0 : i32
    %c0_i32_1 = arith.constant 0 : i32
    return %c0_i32, %c0_i32_0 : i32, i32
  }
  func.func @transform_5(%arg0: i32, %arg1: i32) -> (i32, i32) {
    %c0_i32 = arith.constant 0 : i32
    %c0_i32_0 = arith.constant 0 : i32
    %c0_i32_1 = arith.constant 0 : i32
    return %c0_i32, %c0_i32_0 : i32, i32
  }
  func.func @transform_6(%arg0: i32, %arg1: i32) -> (i32, i32) {
    %c0_i32 = arith.constant 0 : i32
    %c0_i32_0 = arith.constant 0 : i32
    %c0_i32_1 = arith.constant 0 : i32
    return %c0_i32, %c0_i32_0 : i32, i32
  }
  func.func @transform_7(%arg0: i32, %arg1: i32) -> (i32, i32) {
    %c0_i32 = arith.constant 0 : i32
    %c0_i32_0 = arith.constant 0 : i32
    %c0_i32_1 = arith.constant 0 : i32
    return %c0_i32, %c0_i32_0 : i32, i32
  }
  func.func @transform_8(%arg0: i32, %arg1: i32) -> (i32, i32) {
    %c0_i32 = arith.constant 0 : i32
    %c0_i32_0 = arith.constant 0 : i32
    %c0_i32_1 = arith.constant 0 : i32
    return %c0_i32, %c0_i32_0 : i32, i32
  }
  func.func @transform_9(%arg0: i32, %arg1: i32) -> (i32, i32) {
    %c0_i32 = arith.constant 0 : i32
    %c0_i32_0 = arith.constant 0 : i32
    %c0_i32_1 = arith.constant 0 : i32
    return %c0_i32, %c0_i32_0 : i32, i32
  }
  func.func @transform_10(%arg0: i32, %arg1: i32) -> (i32, i32) {
    %c0_i32 = arith.constant 0 : i32
    %c0_i32_0 = arith.constant 0 : i32
    %c0_i32_1 = arith.constant 0 : i32
    return %c0_i32, %c0_i32_0 : i32, i32
  }
  func.func @transform_11(%arg0: i32, %arg1: i32) -> (i32, i32, i32) {
    %c0_i32 = arith.constant 0 : i32
    %c0_i32_0 = arith.constant 0 : i32
    %c0_i32_1 = arith.constant 0 : i32
    return %arg0, %c0_i32, %c0_i32_0 : i32, i32, i32
  }
}

module attributes {stable_mosaic.version = 11 : i64} {
  func.func @_equivariant_update_kernel(%arg0: i32, %arg1: i32, %arg2: memref<8x128xi32, #tpu.memory_space<vmem>>, %arg3: memref<1x128xf32, #tpu.memory_space<vmem>>, %arg4: memref<8x128xf32, #tpu.memory_space<vmem>>, %arg5: memref<128x1xi32, #tpu.memory_space<vmem>>, %arg6: memref<32x128xbf16, #tpu.memory_space<vmem>>, %arg7: memref<32x128xbf16, #tpu.memory_space<vmem>>, %arg8: memref<32x1xf32, #tpu.memory_space<vmem>>, %arg9: memref<32x1xf32, #tpu.memory_space<vmem>>, %arg10: memref<32x32xbf16, #tpu.memory_space<vmem>>, %arg11: memref<32x1xf32, #tpu.memory_space<vmem>>, %arg12: memref<32x1xf32, #tpu.memory_space<vmem>>, %arg13: memref<1x8x128xf32, #tpu.memory_space<vmem>>) attributes {dimension_semantics = [#tpu.dimension_semantics<parallel>, #tpu.dimension_semantics<arbitrary>], iteration_bounds = array<i64: 1, 1>, scalar_prefetch = 0 : i64, scratch_operands = 0 : i64, tpu.core_type = #tpu.core_type<tc>, window_params = [{transform_indices = @transform_0, window_bounds = array<i64: 8, 128>}, {transform_indices = @transform_1, window_bounds = array<i64: 1, 128>}, {transform_indices = @transform_2, window_bounds = array<i64: 8, 128>}, {pipeline_mode = #tpu.pipeline_mode<synchronous>, transform_indices = @transform_3, window_bounds = array<i64: 128, 1>}, {pipeline_mode = #tpu.pipeline_mode<synchronous>, transform_indices = @transform_4, window_bounds = array<i64: 32, 128>}, {pipeline_mode = #tpu.pipeline_mode<synchronous>, transform_indices = @transform_5, window_bounds = array<i64: 32, 128>}, {pipeline_mode = #tpu.pipeline_mode<synchronous>, transform_indices = @transform_6, window_bounds = array<i64: 32, 1>}, {pipeline_mode = #tpu.pipeline_mode<synchronous>, transform_indices = @transform_7, window_bounds = array<i64: 32, 1>}, {pipeline_mode = #tpu.pipeline_mode<synchronous>, transform_indices = @transform_8, window_bounds = array<i64: 32, 32>}, {pipeline_mode = #tpu.pipeline_mode<synchronous>, transform_indices = @transform_9, window_bounds = array<i64: 32, 1>}, {pipeline_mode = #tpu.pipeline_mode<synchronous>, transform_indices = @transform_10, window_bounds = array<i64: 32, 1>}, {transform_indices = @transform_11, window_bounds = array<i64: 1, 8, 128>}]} {
    %c0_i32 = arith.constant 0 : i32
    %0 = arith.cmpi eq, %arg1, %c0_i32 : i32
    %1 = arith.extui %0 : i1 to i32
    %c0_i32_0 = arith.constant 0 : i32
    %2 = arith.cmpi ne, %1, %c0_i32_0 : i32
    scf.if %2 {
      %cst_36 = arith.constant 0.000000e+00 : f32
      %69 = vector.broadcast %cst_36 : f32 to vector<8x128xf32>
      %c0_37 = arith.constant 0 : index
      %c0_38 = arith.constant 0 : index
      %c0_39 = arith.constant 0 : index
      %70 = vector.load %arg13[%c0_37, %c0_38, %c0_39] : memref<1x8x128xf32, #tpu.memory_space<vmem>>, vector<1x8x128xf32>
      %71 = vector.shape_cast %70 : vector<1x8x128xf32> to vector<8x128xf32>
      %72 = vector.shape_cast %69 : vector<8x128xf32> to vector<1x8x128xf32>
      tpu.vector_store %arg13[%c0_37, %c0_38, %c0_39], %72 {strides = array<i32>} : memref<1x8x128xf32, #tpu.memory_space<vmem>>, vector<1x8x128xf32>,
    } else {
    }
    %c0 = arith.constant 0 : index
    %c0_1 = arith.constant 0 : index
    %3 = vector.load %arg2[%c0, %c0_1] : memref<8x128xi32, #tpu.memory_space<vmem>>, vector<1x128xi32>
    %c1 = arith.constant 1 : index
    %c0_2 = arith.constant 0 : index
    %4 = vector.load %arg2[%c1, %c0_2] : memref<8x128xi32, #tpu.memory_space<vmem>>, vector<1x128xi32>
    %c0_3 = arith.constant 0 : index
    %c0_4 = arith.constant 0 : index
    %5 = vector.load %arg5[%c0_3, %c0_4] : memref<128x1xi32, #tpu.memory_space<vmem>>, vector<128x1xi32>
    %6 = vector.broadcast %5 : vector<128x1xi32> to vector<128x128xi32>
    %7 = vector.broadcast %3 : vector<1x128xi32> to vector<128x128xi32>
    %8 = arith.cmpi eq, %6, %7 : vector<128x128xi32>
    %9 = arith.extui %8 : vector<128x128xi1> to vector<128x128xi32>
    %10 = arith.sitofp %9 : vector<128x128xi32> to vector<128x128xf32>
    %11 = arith.truncf %10 : vector<128x128xf32> to vector<128x128xbf16>
    %12 = vector.broadcast %5 : vector<128x1xi32> to vector<128x128xi32>
    %13 = vector.broadcast %4 : vector<1x128xi32> to vector<128x128xi32>
    %14 = arith.cmpi eq, %12, %13 : vector<128x128xi32>
    %15 = arith.extui %14 : vector<128x128xi1> to vector<128x128xi32>
    %16 = arith.sitofp %15 : vector<128x128xi32> to vector<128x128xf32>
    %17 = arith.truncf %16 : vector<128x128xf32> to vector<128x128xbf16>
    %c0_5 = arith.constant 0 : index
    %c0_6 = arith.constant 0 : index
    %18 = vector.load %arg6[%c0_5, %c0_6] : memref<32x128xbf16, #tpu.memory_space<vmem>>, vector<32x128xbf16>
    %cst = arith.constant dense<0.000000e+00> : vector<32x128xf32>
    %19 = tpu.matmul %18, %11, %cst {dimension_numbers = #tpu.dot_dimension_numbers<[1], [0], [0], [1], [0, 0, 1, 1], [], []>} : vector<32x128xbf16>, vector<128x128xbf16>, vector<32x128xf32> -> vector<32x128xf32>
    %c0_7 = arith.constant 0 : index
    %c0_8 = arith.constant 0 : index
    %20 = vector.load %arg7[%c0_7, %c0_8] : memref<32x128xbf16, #tpu.memory_space<vmem>>, vector<32x128xbf16>
    %cst_9 = arith.constant dense<0.000000e+00> : vector<32x128xf32>
    %21 = tpu.matmul %20, %17, %cst_9 {dimension_numbers = #tpu.dot_dimension_numbers<[1], [0], [0], [1], [0, 0, 1, 1], [], []>} : vector<32x128xbf16>, vector<128x128xbf16>, vector<32x128xf32> -> vector<32x128xf32>
    %22 = arith.addf %19, %21 : vector<32x128xf32>
    %c0_10 = arith.constant 0 : index
    %c0_11 = arith.constant 0 : index
    %23 = vector.load %arg9[%c0_10, %c0_11] : memref<32x1xf32, #tpu.memory_space<vmem>>, vector<32x1xf32>
    %24 = vector.broadcast %23 : vector<32x1xf32> to vector<32x128xf32>
    %25 = arith.addf %22, %24 : vector<32x128xf32>
    %c0_12 = arith.constant 0 : index
    %c0_13 = arith.constant 0 : index
    %26 = vector.load %arg3[%c0_12, %c0_13] : memref<1x128xf32, #tpu.memory_space<vmem>>, vector<1x128xf32>
    %c0_14 = arith.constant 0 : index
    %c0_15 = arith.constant 0 : index
    %27 = vector.load %arg8[%c0_14, %c0_15] : memref<32x1xf32, #tpu.memory_space<vmem>>, vector<32x1xf32>
    %28 = vector.broadcast %27 : vector<32x1xf32> to vector<32x128xf32>
    %29 = vector.broadcast %26 : vector<1x128xf32> to vector<32x128xf32>
    %30 = arith.mulf %28, %29 : vector<32x128xf32>
    %31 = arith.addf %25, %30 : vector<32x128xf32>
    %32 = arith.negf %31 : vector<32x128xf32>
    %33 = math.exp %32 : vector<32x128xf32>
    %cst_16 = arith.constant 1.000000e+00 : f32
    %34 = vector.broadcast %cst_16 : f32 to vector<32x128xf32>
    %35 = arith.addf %34, %33 : vector<32x128xf32>
    %36 = arith.divf %34, %35 : vector<32x128xf32>
    %37 = arith.mulf %31, %36 : vector<32x128xf32>
    %c0_17 = arith.constant 0 : index
    %c0_18 = arith.constant 0 : index
    %38 = vector.load %arg10[%c0_17, %c0_18] : memref<32x32xbf16, #tpu.memory_space<vmem>>, vector<32x32xbf16>
    %39 = arith.truncf %37 : vector<32x128xf32> to vector<32x128xbf16>
    %cst_19 = arith.constant dense<0.000000e+00> : vector<32x128xf32>
    %40 = tpu.matmul %38, %39, %cst_19 {dimension_numbers = #tpu.dot_dimension_numbers<[1], [0], [0], [1], [0, 0, 1, 1], [], []>} : vector<32x32xbf16>, vector<32x128xbf16>, vector<32x128xf32> -> vector<32x128xf32>
    %c0_20 = arith.constant 0 : index
    %c0_21 = arith.constant 0 : index
    %41 = vector.load %arg11[%c0_20, %c0_21] : memref<32x1xf32, #tpu.memory_space<vmem>>, vector<32x1xf32>
    %42 = vector.broadcast %41 : vector<32x1xf32> to vector<32x128xf32>
    %43 = arith.addf %40, %42 : vector<32x128xf32>
    %44 = arith.negf %43 : vector<32x128xf32>
    %45 = math.exp %44 : vector<32x128xf32>
    %cst_22 = arith.constant 1.000000e+00 : f32
    %46 = vector.broadcast %cst_22 : f32 to vector<32x128xf32>
    %47 = arith.addf %46, %45 : vector<32x128xf32>
    %48 = arith.divf %46, %47 : vector<32x128xf32>
    %49 = arith.mulf %43, %48 : vector<32x128xf32>
    %c0_23 = arith.constant 0 : index
    %c0_24 = arith.constant 0 : index
    %50 = vector.load %arg12[%c0_23, %c0_24] : memref<32x1xf32, #tpu.memory_space<vmem>>, vector<32x1xf32>
    %51 = vector.broadcast %50 : vector<32x1xf32> to vector<32x128xf32>
    %52 = arith.mulf %49, %51 : vector<32x128xf32>
    %cst_25 = arith.constant dense<0.000000e+00> : vector<128xf32>
    %53 = vector.multi_reduction <add>, %52, %cst_25 [0] : vector<32x128xf32> to vector<128xf32>
    %54 = vector.shape_cast %53 : vector<128xf32> to vector<1x128xf32>
    %55 = math.tanh %54 : vector<1x128xf32>
    %cst_26 = arith.constant 1.000000e+01 : f32
    %56 = vector.broadcast %cst_26 : f32 to vector<1x128xf32>
    %57 = arith.mulf %55, %56 : vector<1x128xf32>
    %c0_27 = arith.constant 0 : index
    %c0_28 = arith.constant 0 : index
    %58 = vector.load %arg4[%c0_27, %c0_28] : memref<8x128xf32, #tpu.memory_space<vmem>>, vector<8x128xf32>
    %59 = vector.broadcast %57 : vector<1x128xf32> to vector<8x128xf32>
    %60 = arith.mulf %58, %59 : vector<8x128xf32>
    %61 = arith.truncf %60 : vector<8x128xf32> to vector<8x128xbf16>
    %c0_29 = arith.constant 0 : index
    %c0_30 = arith.constant 0 : index
    %c0_31 = arith.constant 0 : index
    %62 = vector.load %arg13[%c0_29, %c0_30, %c0_31] : memref<1x8x128xf32, #tpu.memory_space<vmem>>, vector<1x8x128xf32>
    %63 = vector.shape_cast %62 : vector<1x8x128xf32> to vector<8x128xf32>
    %cst_32 = arith.constant dense<0.000000e+00> : vector<8x128xf32>
    %64 = tpu.matmul %61, %11, %cst_32 {dimension_numbers = #tpu.dot_dimension_numbers<[1], [1], [0], [0], [0, 0, 1, 0], [], []>} : vector<8x128xbf16>, vector<128x128xbf16>, vector<8x128xf32> -> vector<8x128xf32>
    %65 = arith.addf %63, %64 : vector<8x128xf32>
    %c0_33 = arith.constant 0 : index
    %c0_34 = arith.constant 0 : index
    %c0_35 = arith.constant 0 : index
    %66 = vector.load %arg13[%c0_33, %c0_34, %c0_35] : memref<1x8x128xf32, #tpu.memory_space<vmem>>, vector<1x8x128xf32>
    %67 = vector.shape_cast %66 : vector<1x8x128xf32> to vector<8x128xf32>
    %68 = vector.shape_cast %65 : vector<8x128xf32> to vector<1x8x128xf32>
    tpu.vector_store %arg13[%c0_33, %c0_34, %c0_35], %68 {strides = array<i32>} : memref<1x8x128xf32, #tpu.memory_space<vmem>>, vector<1x8x128xf32>,
    return
  }
  func.func @transform_0(%arg0: i32, %arg1: i32) -> (i32, i32) {
    %c1_i32 = arith.constant 1 : i32
    %0 = arith.muli %arg0, %c1_i32 : i32
    %1 = arith.addi %0, %arg1 : i32
    %c0_i32 = arith.constant 0 : i32
    %c0_i32_0 = arith.constant 0 : i32
    return %c0_i32, %1 : i32, i32
  }
  func.func @transform_1(%arg0: i32, %arg1: i32) -> (i32, i32) {
    %c1_i32 = arith.constant 1 : i32
    %0 = arith.muli %arg0, %c1_i32 : i32
    %1 = arith.addi %0, %arg1 : i32
    %c0_i32 = arith.constant 0 : i32
    %c0_i32_0 = arith.constant 0 : i32
    return %c0_i32, %1 : i32, i32
  }
  func.func @transform_2(%arg0: i32, %arg1: i32) -> (i32, i32) {
    %c1_i32 = arith.constant 1 : i32
    %0 = arith.muli %arg0, %c1_i32 : i32
    %1 = arith.addi %0, %arg1 : i32
    %c0_i32 = arith.constant 0 : i32
    %c0_i32_0 = arith.constant 0 : i32
    return %c0_i32, %1 : i32, i32
  }
  func.func @transform_3(%arg0: i32, %arg1: i32) -> (i32, i32) {
    %c0_i32 = arith.constant 0 : i32
    %c0_i32_0 = arith.constant 0 : i32
    %c0_i32_1 = arith.constant 0 : i32
    return %c0_i32, %c0_i32_0 : i32, i32
  }
  func.func @transform_4(%arg0: i32, %arg1: i32) -> (i32, i32) {
    %c0_i32 = arith.constant 0 : i32
    %c0_i32_0 = arith.constant 0 : i32
    %c0_i32_1 = arith.constant 0 : i32
    return %c0_i32, %c0_i32_0 : i32, i32
  }
  func.func @transform_5(%arg0: i32, %arg1: i32) -> (i32, i32) {
    %c0_i32 = arith.constant 0 : i32
    %c0_i32_0 = arith.constant 0 : i32
    %c0_i32_1 = arith.constant 0 : i32
    return %c0_i32, %c0_i32_0 : i32, i32
  }
  func.func @transform_6(%arg0: i32, %arg1: i32) -> (i32, i32) {
    %c0_i32 = arith.constant 0 : i32
    %c0_i32_0 = arith.constant 0 : i32
    %c0_i32_1 = arith.constant 0 : i32
    return %c0_i32, %c0_i32_0 : i32, i32
  }
  func.func @transform_7(%arg0: i32, %arg1: i32) -> (i32, i32) {
    %c0_i32 = arith.constant 0 : i32
    %c0_i32_0 = arith.constant 0 : i32
    %c0_i32_1 = arith.constant 0 : i32
    return %c0_i32, %c0_i32_0 : i32, i32
  }
  func.func @transform_8(%arg0: i32, %arg1: i32) -> (i32, i32) {
    %c0_i32 = arith.constant 0 : i32
    %c0_i32_0 = arith.constant 0 : i32
    %c0_i32_1 = arith.constant 0 : i32
    return %c0_i32, %c0_i32_0 : i32, i32
  }
  func.func @transform_9(%arg0: i32, %arg1: i32) -> (i32, i32) {
    %c0_i32 = arith.constant 0 : i32
    %c0_i32_0 = arith.constant 0 : i32
    %c0_i32_1 = arith.constant 0 : i32
    return %c0_i32, %c0_i32_0 : i32, i32
  }
  func.func @transform_10(%arg0: i32, %arg1: i32) -> (i32, i32) {
    %c0_i32 = arith.constant 0 : i32
    %c0_i32_0 = arith.constant 0 : i32
    %c0_i32_1 = arith.constant 0 : i32
    return %c0_i32, %c0_i32_0 : i32, i32
  }
  func.func @transform_11(%arg0: i32, %arg1: i32) -> (i32, i32, i32) {
    %c0_i32 = arith.constant 0 : i32
    %c0_i32_0 = arith.constant 0 : i32
    %c0_i32_1 = arith.constant 0 : i32
    return %arg0, %c0_i32, %c0_i32_0 : i32, i32, i32
  }
}

</mosaic_0001>

<llo_original>
// kernel: tpu_custom_call.1
$region0: #{tpu_custom_call.1}
  #allocation0 [shape = 'u32[]', space=smem, size = 0x4, offset = 0x4, fixed_abs, tag = 'smem constant byte address 0x4 - core index']
  #allocation1 [shape = 'u32[144,128]{1,0:T(1,128)}', space=vmem, size = 0x12000, scoped, tag = 'internal scratch']
  %s0 = inlined_call_operand.vmem [shape: s32[8,128], index: 0, kind: input, shape index: {}]
  %s1 = inlined_call_operand.vmem [shape: f32[1,128], index: 1, kind: input, shape index: {}]
  %s2 = inlined_call_operand.vmem [shape: f32[8,128], index: 2, kind: input, shape index: {}]
  %s3 = inlined_call_operand.vmem [shape: s32[128,1], index: 3, kind: input, shape index: {}]
  %s4 = inlined_call_operand.vmem [shape: bf16[32,128], index: 4, kind: input, shape index: {}]
  %s5 = inlined_call_operand.vmem [shape: bf16[32,128], index: 5, kind: input, shape index: {}]
  %s6 = inlined_call_operand.vmem [shape: f32[32,1], index: 6, kind: input, shape index: {}]
  %s7 = inlined_call_operand.vmem [shape: f32[32,1], index: 7, kind: input, shape index: {}]
  %s8 = inlined_call_operand.vmem [shape: bf16[32,32], index: 8, kind: input, shape index: {}]
  %s9 = inlined_call_operand.vmem [shape: f32[32,1], index: 9, kind: input, shape index: {}]
  %s10 = inlined_call_operand.vmem [shape: f32[32,1], index: 10, kind: input, shape index: {}]
  %s11 = inlined_call_operand.hbm [shape: f32[1,8,128], index: 11, kind: output, shape index: {}]
  %s12 = sld [smem:[#allocation0]]
  $region58: #{tpu_custom_call.1} parent=0
    _
  %s14 = ssub.s32 1, %s12
  %s15 = scalar_select 0, %s14, %s12
  $region1: #{tpu_custom_call.1} parent=0
    #allocation2 [shape = 'u8[4096]{0}', space=vmem, size = 0x1000, scoped, tag = 'output window, operand 0, single buffered']
    #allocation3 [shape = 's32[1]{0}', space=sflag, size = 0x4, scoped, tag = 'scoped memory for tpu_custom_call.1']
    %16 = vsyncpa [#allocation3], 0
    // Predicated region
    $region2: #{tpu_custom_call.1} parent=1 // pred_check
      _
    $region3: #{tpu_custom_call.1} parent=1 // pred_check_branch
      %18 = sbr.rel (0) target = $region5
    $region4: #{tpu_custom_call.1} parent=1 // pred_region
      %s19 = sadd.s32 0, 0
      %p20 = scmp.lt.s32.totalorder %s19, 0
      %s21 = scalar_select %p20, %s19, 0
      %s22 = smul.addr %s21, 8
      %s23 = scalar_lea.vmem %s0, %s22
      %s24 = sadd.s32 0, 0
    $region5: #{tpu_custom_call.1} parent=1 // pred_fallthru
      _
    // Predicated region
    $region6: #{tpu_custom_call.1} parent=1 // pred_check
      _
    $region7: #{tpu_custom_call.1} parent=1 // pred_check_branch
      %26 = sbr.rel (0) target = $region9
    $region8: #{tpu_custom_call.1} parent=1 // pred_region
      %s27 = sadd.s32 0, 0
      %p28 = scmp.lt.s32.totalorder %s27, 0
      %s29 = scalar_select %p28, %s27, 0
      %s30 = scalar_lea.vmem %s1, %s29
      %s31 = sadd.s32 0, 0
    $region9: #{tpu_custom_call.1} parent=1 // pred_fallthru
      _
    // Predicated region
    $region10: #{tpu_custom_call.1} parent=1 // pred_check
      _
    $region11: #{tpu_custom_call.1} parent=1 // pred_check_branch
      %33 = sbr.rel (0) target = $region13
    $region12: #{tpu_custom_call.1} parent=1 // pred_region
      %s34 = sadd.s32 0, 0
      %p35 = scmp.lt.s32.totalorder %s34, 0
      %s36 = scalar_select %p35, %s34, 0
      %s37 = smul.addr %s36, 8
      %s38 = scalar_lea.vmem %s2, %s37
      %s39 = sadd.s32 0, 0
    $region13: #{tpu_custom_call.1} parent=1 // pred_fallthru
      _
    // Predicated region
    $region14: #{tpu_custom_call.1} parent=1 // pred_check
      _
    $region15: #{tpu_custom_call.1} parent=1 // pred_check_branch
      %41 = sbr.rel (0) target = $region17
    $region16: #{tpu_custom_call.1} parent=1 // pred_region
      _
    $region17: #{tpu_custom_call.1} parent=1 // pred_fallthru
      _
    // Predicated region
    $region18: #{tpu_custom_call.1} parent=1 // pred_check
      _
    $region19: #{tpu_custom_call.1} parent=1 // pred_check_branch
      %43 = sbr.rel (0) target = $region21
    $region20: #{tpu_custom_call.1} parent=1 // pred_region
      _
    $region21: #{tpu_custom_call.1} parent=1 // pred_fallthru
      _
    // Predicated region
    $region22: #{tpu_custom_call.1} parent=1 // pred_check
      _
    $region23: #{tpu_custom_call.1} parent=1 // pred_check_branch
      %45 = sbr.rel (0) target = $region25
    $region24: #{tpu_custom_call.1} parent=1 // pred_region
      _
    $region25: #{tpu_custom_call.1} parent=1 // pred_fallthru
      _
    // Predicated region
    $region26: #{tpu_custom_call.1} parent=1 // pred_check
      _
    $region27: #{tpu_custom_call.1} parent=1 // pred_check_branch
      %47 = sbr.rel (0) target = $region29
    $region28: #{tpu_custom_call.1} parent=1 // pred_region
      _
    $region29: #{tpu_custom_call.1} parent=1 // pred_fallthru
      _
    // Predicated region
    $region30: #{tpu_custom_call.1} parent=1 // pred_check
      _
    $region31: #{tpu_custom_call.1} parent=1 // pred_check_branch
      %49 = sbr.rel (0) target = $region33
    $region32: #{tpu_custom_call.1} parent=1 // pred_region
      _
    $region33: #{tpu_custom_call.1} parent=1 // pred_fallthru
      _
    // Predicated region
    $region34: #{tpu_custom_call.1} parent=1 // pred_check
      _
    $region35: #{tpu_custom_call.1} parent=1 // pred_check_branch
      %51 = sbr.rel (0) target = $region37
    $region36: #{tpu_custom_call.1} parent=1 // pred_region
      _
    $region37: #{tpu_custom_call.1} parent=1 // pred_fallthru
      _
    // Predicated region
    $region38: #{tpu_custom_call.1} parent=1 // pred_check
      _
    $region39: #{tpu_custom_call.1} parent=1 // pred_check_branch
      %53 = sbr.rel (0) target = $region41
    $region40: #{tpu_custom_call.1} parent=1 // pred_region
      _
    $region41: #{tpu_custom_call.1} parent=1 // pred_fallthru
      _
    // Predicated region
    $region42: #{tpu_custom_call.1} parent=1 // pred_check
      _
    $region43: #{tpu_custom_call.1} parent=1 // pred_check_branch
      %55 = sbr.rel (0) target = $region45
    $region44: #{tpu_custom_call.1} parent=1 // pred_region
      _
    $region45: #{tpu_custom_call.1} parent=1 // pred_fallthru
      _
    %s56 = sadd.s32 0, 0
    %p57 = scmp.lt.s32.totalorder %s56, 0
    %s58 = scalar_select %p57, %s56, 0
    %s59 = smul.addr %s58, 8
    %s60 = scalar_lea.vmem %s0, %s59
    %s61 = sadd.s32 0, 0
    %p62 = scmp.lt.s32.totalorder %s61, 0
    %s63 = scalar_select %p62, %s61, 0
    %s64 = scalar_lea.vmem %s1, %s63
    %s65 = sadd.s32 0, 0
    %p66 = scmp.lt.s32.totalorder %s65, 0
    %s67 = scalar_select %p66, %s65, 0
    %s68 = smul.addr %s67, 8
    %s69 = scalar_lea.vmem %s2, %s68
    %s70 = sadd.s32 0, 0
    %p71 = scmp.lt.s32.totalorder %s70, 0
    %s72 = scalar_select %p71, %s70, 0
    %s73 = smul.addr %s72, 8
    %s74 = scalar_lea.vmem %s0, %s73
    %s75 = sadd.s32 0, 0
    %s76 = sadd.s32 0, 0
    %p77 = scmp.lt.s32.totalorder %s76, 0
    %s78 = scalar_select %p77, %s76, 0
    %s79 = scalar_lea.vmem %s1, %s78
    %s80 = sadd.s32 0, 0
    %s81 = sadd.s32 0, 0
    %p82 = scmp.lt.s32.totalorder %s81, 0
    %s83 = scalar_select %p82, %s81, 0
    %s84 = smul.addr %s83, 8
    %s85 = scalar_lea.vmem %s2, %s84
    %s86 = sadd.s32 0, 0
    %p88 = scmp.eq.s32.totalorder 0, 0
    // Predicated region
    $region46: #{tpu_custom_call.1} parent=1 // pred_check
      %p89 = pneg %p88
    $region47: #{tpu_custom_call.1} parent=1 // pred_check_branch
      %91 = sbr.rel (%p89) target = $region49
    $region48: #{tpu_custom_call.1} parent=1 // pred_region
      %92 = vst [vmem:[#allocation2] sm:$0xff] 0.0
    $region49: #{tpu_custom_call.1} parent=1 // pred_fallthru
      _
    %v93 = vld [vmem:[%s74] sm:$0x1]
    %v94 = vld [vmem:[%s74 + $0x1] sm:$0x1]
    %v95 = vld [vmem:[%s3] sm:$0xff]
    %v96 = vld [vmem:[%s3 + $0x8] sm:$0xff]
    %v97 = vld [vmem:[%s3 + $0x10] sm:$0xff]
    %v98 = vld [vmem:[%s3 + $0x18] sm:$0xff]
    %v99 = vld [vmem:[%s3 + $0x20] sm:$0xff]
    %v100 = vld [vmem:[%s3 + $0x28] sm:$0xff]
    %v101 = vld [vmem:[%s3 + $0x30] sm:$0xff]
    %v102 = vld [vmem:[%s3 + $0x38] sm:$0xff]
    %v103 = vld [vmem:[%s3 + $0x40] sm:$0xff]
    %v104 = vld [vmem:[%s3 + $0x48] sm:$0xff]
    %v105 = vld [vmem:[%s3 + $0x50] sm:$0xff]
    %v106 = vld [vmem:[%s3 + $0x58] sm:$0xff]
    %v107 = vld [vmem:[%s3 + $0x60] sm:$0xff]
    %v108 = vld [vmem:[%s3 + $0x68] sm:$0xff]
    %v109 = vld [vmem:[%s3 + $0x70] sm:$0xff]
    %v110 = vld [vmem:[%s3 + $0x78] sm:$0xff]
    %111 = vset.pattern.permute.xlu0 0
    %112 = vperm.xlu0 %111, %v95
    %v113 = vpop.permute.xlu0 %112
    %114 = vset.pattern.permute.xlu0 0
    %115 = vperm.xlu0 %114, %v96
    %v116 = vpop.permute.xlu0 %115
    %117 = vset.pattern.permute.xlu0 0
    %118 = vperm.xlu0 %117, %v97
    %v119 = vpop.permute.xlu0 %118
    %120 = vset.pattern.permute.xlu0 0
    %121 = vperm.xlu0 %120, %v98
    %v122 = vpop.permute.xlu0 %121
    %123 = vset.pattern.permute.xlu0 0
    %124 = vperm.xlu0 %123, %v99
    %v125 = vpop.permute.xlu0 %124
    %126 = vset.pattern.permute.xlu0 0
    %127 = vperm.xlu0 %126, %v100
    %v128 = vpop.permute.xlu0 %127
    %129 = vset.pattern.permute.xlu0 0
    %130 = vperm.xlu0 %129, %v101
    %v131 = vpop.permute.xlu0 %130
    %132 = vset.pattern.permute.xlu0 0
    %133 = vperm.xlu0 %132, %v102
    %v134 = vpop.permute.xlu0 %133
    %135 = vset.pattern.permute.xlu0 0
    %136 = vperm.xlu0 %135, %v103
    %v137 = vpop.permute.xlu0 %136
    %138 = vset.pattern.permute.xlu0 0
    %139 = vperm.xlu0 %138, %v104
    %v140 = vpop.permute.xlu0 %139
    %141 = vset.pattern.permute.xlu0 0
    %142 = vperm.xlu0 %141, %v105
    %v143 = vpop.permute.xlu0 %142
    %144 = vset.pattern.permute.xlu0 0
    %145 = vperm.xlu0 %144, %v106
    %v146 = vpop.permute.xlu0 %145
    %147 = vset.pattern.permute.xlu0 0
    %148 = vperm.xlu0 %147, %v107
    %v149 = vpop.permute.xlu0 %148
    %150 = vset.pattern.permute.xlu0 0
    %151 = vperm.xlu0 %150, %v108
    %v152 = vpop.permute.xlu0 %151
    %153 = vset.pattern.permute.xlu0 0
    %154 = vperm.xlu0 %153, %v109
    %v155 = vpop.permute.xlu0 %154
    %156 = vset.pattern.permute.xlu0 0
    %157 = vperm.xlu0 %156, %v110
    %v158 = vpop.permute.xlu0 %157
    %v159 = vlaneseq
    %v160 = vshrl.u32 %v159, 7
    %v161 = vsub.s32 0, %v160
    %v162 = vrot.slane %v93, %v161
    %vm163 = vcmp.eq.s32.totalorder %v113, %v162
    %vm164 = vcmp.eq.s32.totalorder %v116, %v162
    %vm165 = vcmp.eq.s32.totalorder %v119, %v162
    %vm166 = vcmp.eq.s32.totalorder %v122, %v162
    %vm167 = vcmp.eq.s32.totalorder %v125, %v162
    %vm168 = vcmp.eq.s32.totalorder %v128, %v162
    %vm169 = vcmp.eq.s32.totalorder %v131, %v162
    %vm170 = vcmp.eq.s32.totalorder %v134, %v162
    %vm171 = vcmp.eq.s32.totalorder %v137, %v162
    %vm172 = vcmp.eq.s32.totalorder %v140, %v162
    %vm173 = vcmp.eq.s32.totalorder %v143, %v162
    %vm174 = vcmp.eq.s32.totalorder %v146, %v162
    %vm175 = vcmp.eq.s32.totalorder %v149, %v162
    %vm176 = vcmp.eq.s32.totalorder %v152, %v162
    %vm177 = vcmp.eq.s32.totalorder %v155, %v162
    %vm178 = vcmp.eq.s32.totalorder %v158, %v162
    %v179 = vsel %vm163, 1, 0
    %v180 = vsel %vm164, 1, 0
    %v181 = vsel %vm165, 1, 0
    %v182 = vsel %vm166, 1, 0
    %v183 = vsel %vm167, 1, 0
    %v184 = vsel %vm168, 1, 0
    %v185 = vsel %vm169, 1, 0
    %v186 = vsel %vm170, 1, 0
    %v187 = vsel %vm171, 1, 0
    %v188 = vsel %vm172, 1, 0
    %v189 = vsel %vm173, 1, 0
    %v190 = vsel %vm174, 1, 0
    %v191 = vsel %vm175, 1, 0
    %v192 = vsel %vm176, 1, 0
    %v193 = vsel %vm177, 1, 0
    %v194 = vsel %vm178, 1, 0
    %v195 = vcvt.s32.f32 %v179
    %v196 = vcvt.s32.f32 %v180
    %v197 = vcvt.s32.f32 %v181
    %v198 = vcvt.s32.f32 %v182
    %v199 = vcvt.s32.f32 %v183
    %v200 = vcvt.s32.f32 %v184
    %v201 = vcvt.s32.f32 %v185
    %v202 = vcvt.s32.f32 %v186
    %v203 = vcvt.s32.f32 %v187
    %v204 = vcvt.s32.f32 %v188
    %v205 = vcvt.s32.f32 %v189
    %v206 = vcvt.s32.f32 %v190
    %v207 = vcvt.s32.f32 %v191
    %v208 = vcvt.s32.f32 %v192
    %v209 = vcvt.s32.f32 %v193
    %v210 = vcvt.s32.f32 %v194
    %v211 = vpack.c.bf16 %v196, %v195
    %v212 = vpack.c.bf16 %v198, %v197
    %v213 = vpack.c.bf16 %v200, %v199
    %v214 = vpack.c.bf16 %v202, %v201
    %v215 = vpack.c.bf16 %v204, %v203
    %v216 = vpack.c.bf16 %v206, %v205
    %v217 = vpack.c.bf16 %v208, %v207
    %v218 = vpack.c.bf16 %v210, %v209
    %v219 = vlaneseq
    %v220 = vshrl.u32 %v219, 7
    %v221 = vsub.s32 0, %v220
    %v222 = vrot.slane %v94, %v221
    %vm223 = vcmp.eq.s32.totalorder %v113, %v222
    %vm224 = vcmp.eq.s32.totalorder %v116, %v222
    %vm225 = vcmp.eq.s32.totalorder %v119, %v222
    %vm226 = vcmp.eq.s32.totalorder %v122, %v222
    %vm227 = vcmp.eq.s32.totalorder %v125, %v222
    %vm228 = vcmp.eq.s32.totalorder %v128, %v222
    %vm229 = vcmp.eq.s32.totalorder %v131, %v222
    %vm230 = vcmp.eq.s32.totalorder %v134, %v222
    %vm231 = vcmp.eq.s32.totalorder %v137, %v222
    %vm232 = vcmp.eq.s32.totalorder %v140, %v222
    %vm233 = vcmp.eq.s32.totalorder %v143, %v222
    %vm234 = vcmp.eq.s32.totalorder %v146, %v222
    %vm235 = vcmp.eq.s32.totalorder %v149, %v222
    %vm236 = vcmp.eq.s32.totalorder %v152, %v222
    %vm237 = vcmp.eq.s32.totalorder %v155, %v222
    %vm238 = vcmp.eq.s32.totalorder %v158, %v222
    %v239 = vsel %vm223, 1, 0
    %v240 = vsel %vm224, 1, 0
    %v241 = vsel %vm225, 1, 0
    %v242 = vsel %vm226, 1, 0
    %v243 = vsel %vm227, 1, 0
    %v244 = vsel %vm228, 1, 0
    %v245 = vsel %vm229, 1, 0
    %v246 = vsel %vm230, 1, 0
    %v247 = vsel %vm231, 1, 0
    %v248 = vsel %vm232, 1, 0
    %v249 = vsel %vm233, 1, 0
    %v250 = vsel %vm234, 1, 0
    %v251 = vsel %vm235, 1, 0
    %v252 = vsel %vm236, 1, 0
    %v253 = vsel %vm237, 1, 0
    %v254 = vsel %vm238, 1, 0
    %v255 = vcvt.s32.f32 %v239
    %v256 = vcvt.s32.f32 %v240
    %v257 = vcvt.s32.f32 %v241
    %v258 = vcvt.s32.f32 %v242
    %v259 = vcvt.s32.f32 %v243
    %v260 = vcvt.s32.f32 %v244
    %v261 = vcvt.s32.f32 %v245
    %v262 = vcvt.s32.f32 %v246
    %v263 = vcvt.s32.f32 %v247
    %v264 = vcvt.s32.f32 %v248
    %v265 = vcvt.s32.f32 %v249
    %v266 = vcvt.s32.f32 %v250
    %v267 = vcvt.s32.f32 %v251
    %v268 = vcvt.s32.f32 %v252
    %v269 = vcvt.s32.f32 %v253
    %v270 = vcvt.s32.f32 %v254
    %v271 = vpack.c.bf16 %v256, %v255
    %v272 = vpack.c.bf16 %v258, %v257
    %v273 = vpack.c.bf16 %v260, %v259
    %v274 = vpack.c.bf16 %v262, %v261
    %v275 = vpack.c.bf16 %v264, %v263
    %v276 = vpack.c.bf16 %v266, %v265
    %v277 = vpack.c.bf16 %v268, %v267
    %v278 = vpack.c.bf16 %v270, %v269
    %v279 = vld [vmem:[%s4] sm:$0xf]
    %v280 = vld [vmem:[%s4 + $0x4] sm:$0xf]
    %v281 = vld [vmem:[%s4 + $0x8] sm:$0xf]
    %v282 = vld [vmem:[%s4 + $0xc] sm:$0xf]
    %v283 = vld [vmem:[%s5] sm:$0xf]
    %v284 = vld [vmem:[%s5 + $0x4] sm:$0xf]
    %v285 = vld [vmem:[%s5 + $0x8] sm:$0xf]
    %v286 = vld [vmem:[%s5 + $0xc] sm:$0xf]
    %v291 = vunpack.c.l.b16 %v283
    %v292 = vunpack.c.l.b16 %v284
    %v293 = vunpack.c.l.b16 %v285
    %v294 = vunpack.c.l.b16 %v286
    %v295 = vpack.c.b16 %v292, %v291
    %v296 = vpack.c.b16 %v294, %v293
    %299 = vmatprep.subr.bf16.mxu0 0
    %300 = vmatpush1.bf16.msra.mxu0 %v278
    %301 = vmatprep.subr.bf16.mxu0 0
    %302 = vmatpush1.bf16.msra.mxu0 %v277
    %303 = vmatprep.subr.bf16.mxu0 0
    %304 = vmatpush1.bf16.msra.mxu0 %v276
    %305 = vmatprep.subr.bf16.mxu0 0
    %306 = vmatpush1.bf16.msra.mxu0 %v275
    %307 = vmatprep.subr.bf16.mxu0 0
    %308 = vmatpush1.bf16.msra.mxu0 %v274
    %309 = vmatprep.subr.bf16.mxu0 0
    %310 = vmatpush1.bf16.msra.mxu0 %v273
    %311 = vmatprep.subr.bf16.mxu0 0
    %312 = vmatpush1.bf16.msra.mxu0 %v272
    %313 = vmatprep.subr.bf16.mxu0 0
    %314 = vmatpush1.bf16.msra.mxu0 %v271
    %315 = vmatprep.subr.bf16.mxu0 0
    %316 = vmatpush2.bf16.msra.mxu0 0
    %317 = vmatprep.subr.bf16.mxu0 0
    %318 = vmatpush2.bf16.msra.mxu0 0
    %319 = vmatprep.subr.bf16.mxu0 0
    %320 = vmatpush2.bf16.msra.mxu0 0
    %321 = vmatprep.subr.bf16.mxu0 0
    %322 = vmatpush2.bf16.msra.mxu0 0
    %323 = vmatprep.subr.bf16.mxu0 0
    %324 = vmatpush2.bf16.msra.mxu0 0
    %325 = vmatprep.subr.bf16.mxu0 0
    %326 = vmatpush2.bf16.msra.mxu0 0
    %327 = vmatprep.subr.bf16.mxu0 0
    %328 = vmatpush2.bf16.msra.mxu0 0
    %329 = vmatprep.subr.bf16.mxu0 0
    %330 = vmatpush2.bf16.msra.mxu0 0
    %331 = vmatprep.mubr.bf16.mxu0 0
    %332 = vmatmul.mubr.bf16.gmra.mxu0 %v295
    %v333 = vpop.f32.mrf.mxu0
    %v334 = vadd.f32 0.0, %v333
    %v335 = vpop.f32.mrf.mxu0
    %v336 = vpop.f32.mrf.mxu0
    %v337 = vadd.f32 0.0, %v336
    %v338 = vpop.f32.mrf.mxu0
    %339 = vmatprep.mubr.bf16.mxu0 0
    %340 = vmatmul.mubr.bf16.gmra.mxu0 %v296
    %v341 = vpop.f32.mrf.mxu0
    %v342 = vadd.f32 0.0, %v341
    %v343 = vpop.f32.mrf.mxu0
    %v344 = vpop.f32.mrf.mxu0
    %v345 = vadd.f32 0.0, %v344
    %v346 = vpop.f32.mrf.mxu0
    %347 = vdwg.mxu0
    %v352 = vunpack.c.l.b16 %v279
    %v353 = vunpack.c.l.b16 %v280
    %v354 = vunpack.c.l.b16 %v281
    %v355 = vunpack.c.l.b16 %v282
    %v356 = vpack.c.b16 %v353, %v352
    %v357 = vpack.c.b16 %v355, %v354
    %360 = vmatprep.subr.bf16.mxu0 0
    %361 = vmatpush1.bf16.msra.mxu0 %v218
    %362 = vmatprep.subr.bf16.mxu0 0
    %363 = vmatpush1.bf16.msra.mxu0 %v217
    %364 = vmatprep.subr.bf16.mxu0 0
    %365 = vmatpush1.bf16.msra.mxu0 %v216
    %366 = vmatprep.subr.bf16.mxu0 0
    %367 = vmatpush1.bf16.msra.mxu0 %v215
    %368 = vmatprep.subr.bf16.mxu0 0
    %369 = vmatpush1.bf16.msra.mxu0 %v214
    %370 = vmatprep.subr.bf16.mxu0 0
    %371 = vmatpush1.bf16.msra.mxu0 %v213
    %372 = vmatprep.subr.bf16.mxu0 0
    %373 = vmatpush1.bf16.msra.mxu0 %v212
    %374 = vmatprep.subr.bf16.mxu0 0
    %375 = vmatpush1.bf16.msra.mxu0 %v211
    %376 = vmatprep.subr.bf16.mxu0 0
    %377 = vmatpush2.bf16.msra.mxu0 0
    %378 = vmatprep.subr.bf16.mxu0 0
    %379 = vmatpush2.bf16.msra.mxu0 0
    %380 = vmatprep.subr.bf16.mxu0 0
    %381 = vmatpush2.bf16.msra.mxu0 0
    %382 = vmatprep.subr.bf16.mxu0 0
    %383 = vmatpush2.bf16.msra.mxu0 0
    %384 = vmatprep.subr.bf16.mxu0 0
    %385 = vmatpush2.bf16.msra.mxu0 0
    %386 = vmatprep.subr.bf16.mxu0 0
    %387 = vmatpush2.bf16.msra.mxu0 0
    %388 = vmatprep.subr.bf16.mxu0 0
    %389 = vmatpush2.bf16.msra.mxu0 0
    %390 = vmatprep.subr.bf16.mxu0 0
    %391 = vmatpush2.bf16.msra.mxu0 0
    %392 = vmatprep.mubr.bf16.mxu0 0
    %393 = vmatmul.mubr.bf16.gmra.mxu0 %v356
    %v394 = vpop.f32.mrf.mxu0
    %v395 = vadd.f32 %v334, %v394
    %v396 = vpop.f32.mrf.mxu0
    %v397 = vpop.f32.mrf.mxu0
    %v398 = vadd.f32 %v337, %v397
    %v399 = vpop.f32.mrf.mxu0
    %400 = vmatprep.mubr.bf16.mxu0 0
    %401 = vmatmul.mubr.bf16.gmra.mxu0 %v357
    %v402 = vpop.f32.mrf.mxu0
    %v403 = vadd.f32 %v342, %v402
    %v404 = vpop.f32.mrf.mxu0
    %v405 = vpop.f32.mrf.mxu0
    %v406 = vadd.f32 %v345, %v405
    %v407 = vpop.f32.mrf.mxu0
    %408 = vdwg.mxu0
    %v409 = vld [vmem:[%s7] sm:$0xff]
    %v410 = vld [vmem:[%s7 + $0x8] sm:$0xff]
    %v411 = vld [vmem:[%s7 + $0x10] sm:$0xff]
    %v412 = vld [vmem:[%s7 + $0x18] sm:$0xff]
    %414 = vset.pattern.permute.xlu0 0
    %415 = vperm.xlu0 %414, %v409
    %v416 = vpop.permute.xlu0 %415
    %419 = vset.pattern.permute.xlu0 0
    %420 = vperm.xlu0 %419, %v410
    %v421 = vpop.permute.xlu0 %420
    %424 = vset.pattern.permute.xlu0 0
    %425 = vperm.xlu0 %424, %v411
    %v426 = vpop.permute.xlu0 %425
    %429 = vset.pattern.permute.xlu0 0
    %430 = vperm.xlu0 %429, %v412
    %v431 = vpop.permute.xlu0 %430
    %v433 = vadd.f32 %v395, %v416
    %v434 = vadd.f32 %v398, %v421
    %v435 = vadd.f32 %v403, %v426
    %v436 = vadd.f32 %v406, %v431
    %v437 = vld [vmem:[%s79] sm:$0x1]
    %v438 = vld [vmem:[%s6] sm:$0xff]
    %v439 = vld [vmem:[%s6 + $0x8] sm:$0xff]
    %v440 = vld [vmem:[%s6 + $0x10] sm:$0xff]
    %v441 = vld [vmem:[%s6 + $0x18] sm:$0xff]
    %443 = vset.pattern.permute.xlu0 0
    %444 = vperm.xlu0 %443, %v438
    %v445 = vpop.permute.xlu0 %444
    %448 = vset.pattern.permute.xlu0 0
    %449 = vperm.xlu0 %448, %v439
    %v450 = vpop.permute.xlu0 %449
    %453 = vset.pattern.permute.xlu0 0
    %454 = vperm.xlu0 %453, %v440
    %v455 = vpop.permute.xlu0 %454
    %458 = vset.pattern.permute.xlu0 0
    %459 = vperm.xlu0 %458, %v441
    %v460 = vpop.permute.xlu0 %459
    %v463 = vlaneseq
    %v464 = vshrl.u32 %v463, 7
    %v465 = vsub.s32 0, %v464
    %v466 = vrot.slane %v437, %v465
    %v468 = vmul.f32 %v445, %v466
    %v469 = vmul.f32 %v450, %v466
    %v470 = vmul.f32 %v455, %v466
    %v471 = vmul.f32 %v460, %v466
    %v472 = vadd.f32 %v433, %v468
    %v473 = vadd.f32 %v434, %v469
    %v474 = vadd.f32 %v435, %v470
    %v475 = vadd.f32 %v436, %v471
    %v476 = vxor.u32 %v472, 2147483648
    %v477 = vxor.u32 %v473, 2147483648
    %v478 = vxor.u32 %v474, 2147483648
    %v479 = vxor.u32 %v475, 2147483648
    %v480 = vmul.f32 %v476, 1.442695
    %v481 = vpow.pop %v480
    %v482 = vmul.f32 %v477, 1.442695
    %v483 = vpow.pop %v482
    %v484 = vmul.f32 %v478, 1.442695
    %v485 = vpow.pop %v484
    %v486 = vmul.f32 %v479, 1.442695
    %v487 = vpow.pop %v486
    %v488 = vadd.f32 %v481, 1.0
    %v489 = vadd.f32 %v483, 1.0
    %v490 = vadd.f32 %v485, 1.0
    %v491 = vadd.f32 %v487, 1.0
    %v492 = vrcp.pop %v488
    %v493 = vmul.f32 1.0, %v492
    %v494 = vrcp.pop %v489
    %v495 = vmul.f32 1.0, %v494
    %v496 = vrcp.pop %v490
    %v497 = vmul.f32 1.0, %v496
    %v498 = vrcp.pop %v491
    %v499 = vmul.f32 1.0, %v498
    %v500 = vmul.f32 %v472, %v493
    %v501 = vmul.f32 %v473, %v495
    %v502 = vmul.f32 %v474, %v497
    %v503 = vmul.f32 %v475, %v499
    %v504 = vld [vmem:[%s8] sm:$0xf]
    %v505 = vld [vmem:[%s8 + $0x4] sm:$0xf]
    %v506 = vld [vmem:[%s8 + $0x8] sm:$0xf]
    %v507 = vld [vmem:[%s8 + $0xc] sm:$0xf]
    %v508 = vpack.c.bf16 %v501, %v500
    %v509 = vpack.c.bf16 %v503, %v502
    %v510 = vld [vmem:[%s9] sm:$0xff]
    %v511 = vld [vmem:[%s9 + $0x8] sm:$0xff]
    %v512 = vld [vmem:[%s9 + $0x10] sm:$0xff]
    %v513 = vld [vmem:[%s9 + $0x18] sm:$0xff]
    %515 = vset.pattern.permute.xlu0 0
    %516 = vperm.xlu0 %515, %v510
    %v517 = vpop.permute.xlu0 %516
    %520 = vset.pattern.permute.xlu0 0
    %521 = vperm.xlu0 %520, %v511
    %v522 = vpop.permute.xlu0 %521
    %525 = vset.pattern.permute.xlu0 0
    %526 = vperm.xlu0 %525, %v512
    %v527 = vpop.permute.xlu0 %526
    %530 = vset.pattern.permute.xlu0 0
    %531 = vperm.xlu0 %530, %v513
    %v532 = vpop.permute.xlu0 %531
    %v538 = vunpack.c.l.b16 %v504
    %v539 = vunpack.c.l.b16 %v505
    %v540 = vunpack.c.l.b16 %v506
    %v541 = vunpack.c.l.b16 %v507
    %v542 = vpack.c.b16 %v539, %v538
    %v543 = vpack.c.b16 %v541, %v540
    %vm544 = vcmask 261120
    %v546 = vsel %vm544, %v542, 0
    %v549 = vsel %vm544, %v543, 0
    %551 = vmatprep.subr.bf16.mxu0 0
    %552 = vmatpush1.bf16.msra.mxu0 0
    %553 = vmatprep.subr.bf16.mxu0 0
    %554 = vmatpush1.bf16.msra.mxu0 0
    %555 = vmatprep.subr.bf16.mxu0 0
    %556 = vmatpush1.bf16.msra.mxu0 0
    %557 = vmatprep.subr.bf16.mxu0 0
    %558 = vmatpush1.bf16.msra.mxu0 0
    %559 = vmatprep.subr.bf16.mxu0 0
    %560 = vmatpush1.bf16.msra.mxu0 0
    %561 = vmatprep.subr.bf16.mxu0 0
    %562 = vmatpush1.bf16.msra.mxu0 0
    %563 = vmatprep.subr.bf16.mxu0 0
    %564 = vmatpush1.bf16.msra.mxu0 %v509
    %565 = vmatprep.subr.bf16.mxu0 0
    %566 = vmatpush1.bf16.msra.mxu0 %v508
    %567 = vmatprep.subr.bf16.mxu0 0
    %568 = vmatpush2.bf16.msra.mxu0 0
    %569 = vmatprep.subr.bf16.mxu0 0
    %570 = vmatpush2.bf16.msra.mxu0 0
    %571 = vmatprep.subr.bf16.mxu0 0
    %572 = vmatpush2.bf16.msra.mxu0 0
    %573 = vmatprep.subr.bf16.mxu0 0
    %574 = vmatpush2.bf16.msra.mxu0 0
    %575 = vmatprep.subr.bf16.mxu0 0
    %576 = vmatpush2.bf16.msra.mxu0 0
    %577 = vmatprep.subr.bf16.mxu0 0
    %578 = vmatpush2.bf16.msra.mxu0 0
    %579 = vmatprep.subr.bf16.mxu0 0
    %580 = vmatpush2.bf16.msra.mxu0 0
    %581 = vmatprep.subr.bf16.mxu0 0
    %582 = vmatpush2.bf16.msra.mxu0 0
    %583 = vmatprep.mubr.bf16.mxu0 0
    %584 = vmatmul.mubr.bf16.gmra.mxu0 %v546
    %v585 = vpop.f32.mrf.mxu0
    %v586 = vadd.f32 %v517, %v585
    %v587 = vpop.f32.mrf.mxu0
    %v588 = vpop.f32.mrf.mxu0
    %v589 = vadd.f32 %v522, %v588
    %v590 = vpop.f32.mrf.mxu0
    %591 = vmatprep.mubr.bf16.mxu0 0
    %592 = vmatmul.mubr.bf16.gmra.mxu0 %v549
    %v593 = vpop.f32.mrf.mxu0
    %v594 = vadd.f32 %v527, %v593
    %v595 = vpop.f32.mrf.mxu0
    %v596 = vpop.f32.mrf.mxu0
    %v597 = vadd.f32 %v532, %v596
    %v598 = vpop.f32.mrf.mxu0
    %599 = vdwg.mxu0
    %v600 = vxor.u32 %v586, 2147483648
    %v601 = vxor.u32 %v589, 2147483648
    %v602 = vxor.u32 %v594, 2147483648
    %v603 = vxor.u32 %v597, 2147483648
    %v604 = vmul.f32 %v600, 1.442695
    %v605 = vpow.pop %v604
    %v606 = vmul.f32 %v601, 1.442695
    %v607 = vpow.pop %v606
    %v608 = vmul.f32 %v602, 1.442695
    %v609 = vpow.pop %v608
    %v610 = vmul.f32 %v603, 1.442695
    %v611 = vpow.pop %v610
    %v612 = vadd.f32 %v605, 1.0
    %v613 = vadd.f32 %v607, 1.0
    %v614 = vadd.f32 %v609, 1.0
    %v615 = vadd.f32 %v611, 1.0
    %v616 = vrcp.pop %v612
    %v617 = vmul.f32 1.0, %v616
    %v618 = vrcp.pop %v613
    %v619 = vmul.f32 1.0, %v618
    %v620 = vrcp.pop %v614
    %v621 = vmul.f32 1.0, %v620
    %v622 = vrcp.pop %v615
    %v623 = vmul.f32 1.0, %v622
    %v624 = vmul.f32 %v586, %v617
    %v625 = vmul.f32 %v589, %v619
    %v626 = vmul.f32 %v594, %v621
    %v627 = vmul.f32 %v597, %v623
    %v628 = vld [vmem:[%s10] sm:$0xff]
    %v629 = vld [vmem:[%s10 + $0x8] sm:$0xff]
    %v630 = vld [vmem:[%s10 + $0x10] sm:$0xff]
    %v631 = vld [vmem:[%s10 + $0x18] sm:$0xff]
    %633 = vset.pattern.permute.xlu0 0
    %634 = vperm.xlu0 %633, %v628
    %v635 = vpop.permute.xlu0 %634
    %638 = vset.pattern.permute.xlu0 0
    %639 = vperm.xlu0 %638, %v629
    %v640 = vpop.permute.xlu0 %639
    %643 = vset.pattern.permute.xlu0 0
    %644 = vperm.xlu0 %643, %v630
    %v645 = vpop.permute.xlu0 %644
    %648 = vset.pattern.permute.xlu0 0
    %649 = vperm.xlu0 %648, %v631
    %v650 = vpop.permute.xlu0 %649
    %v652 = vmul.f32 %v624, %v635
    %v653 = vmul.f32 %v625, %v640
    %v654 = vmul.f32 %v626, %v645
    %v655 = vmul.f32 %v627, %v650
    %v656 = vadd.f32 %v652, %v653
    %v657 = vadd.f32 %v656, %v654
    %v658 = vadd.f32 %v657, %v655
    %v659 = vrot.slane %v658, 4
    %v660 = vadd.f32 %v658, %v659
    %v661 = vrot.slane %v660, 2
    %v662 = vadd.f32 %v660, %v661
    %v663 = vrot.slane %v662, 1
    %v664 = vadd.f32 %v662, %v663
    %v665 = vtanh.pop %v664
    %v666 = vmul.f32 %v665, 10.0
    %v667 = vld [vmem:[%s85] sm:$0xff]
    %v668 = vmul.f32 %v667, %v666
    %v669 = vpack.c.bf16 %v668, %v668
    %v670 = vld [vmem:[#allocation2] sm:$0xff]
    %671 = vmatprep.subr.bf16.mxu0 0
    %672 = vmatpush1.bf16.xpose.msra.mxu0 %v218
    %673 = vmatprep.subr.bf16.mxu0 0
    %674 = vmatpush1.bf16.xpose.msra.mxu0 %v217
    %675 = vmatprep.subr.bf16.mxu0 0
    %676 = vmatpush1.bf16.xpose.msra.mxu0 %v216
    %677 = vmatprep.subr.bf16.mxu0 0
    %678 = vmatpush1.bf16.xpose.msra.mxu0 %v215
    %679 = vmatprep.subr.bf16.mxu0 0
    %680 = vmatpush1.bf16.xpose.msra.mxu0 %v214
    %681 = vmatprep.subr.bf16.mxu0 0
    %682 = vmatpush1.bf16.xpose.msra.mxu0 %v213
    %683 = vmatprep.subr.bf16.mxu0 0
    %684 = vmatpush1.bf16.xpose.msra.mxu0 %v212
    %685 = vmatprep.subr.bf16.mxu0 0
    %686 = vmatpush1.bf16.xpose.msra.mxu0 %v211
    %687 = vmatprep.subr.bf16.mxu0 0
    %688 = vmatpush2.bf16.xpose.msra.mxu0 0
    %689 = vmatprep.subr.bf16.mxu0 0
    %690 = vmatpush2.bf16.xpose.msra.mxu0 0
    %691 = vmatprep.subr.bf16.mxu0 0
    %692 = vmatpush2.bf16.xpose.msra.mxu0 0
    %693 = vmatprep.subr.bf16.mxu0 0
    %694 = vmatpush2.bf16.xpose.msra.mxu0 0
    %695 = vmatprep.subr.bf16.mxu0 0
    %696 = vmatpush2.bf16.xpose.msra.mxu0 0
    %697 = vmatprep.subr.bf16.mxu0 0
    %698 = vmatpush2.bf16.xpose.msra.mxu0 0
    %699 = vmatprep.subr.bf16.mxu0 0
    %700 = vmatpush2.bf16.xpose.msra.mxu0 0
    %701 = vmatprep.subr.bf16.mxu0 0
    %702 = vmatpush2.bf16.xpose.msra.mxu0 0
    %703 = vmatprep.mubr.bf16.mxu0 0
    %704 = vmatmul.mubr.bf16.gmra.mxu0 %v669
    %v705 = vpop.f32.mrf.mxu0
    %v706 = vadd.f32 0.0, %v705
    %v707 = vpop.f32.mrf.mxu0
    %v708 = vpop.f32.mrf.mxu0
    %v709 = vpop.f32.mrf.mxu0
    %710 = vdwg.mxu0
    %v711 = vadd.f32 %v670, %v706
    %712 = vst [vmem:[#allocation2] sm:$0xff] %v711
    // Predicated region
    $region50: #{tpu_custom_call.1} parent=1 // pred_check
      _
    $region51: #{tpu_custom_call.1} parent=1 // pred_check_branch
      %714 = sbr.rel (0) target = $region53
    $region52: #{tpu_custom_call.1} parent=1 // pred_region
      %s716 = ssub.s32 128, 128
      %717 = vsyncadd [#allocation3], %s716
      %s719 = sshll.u32 [#allocation2], 4
      %s720 = int_to_ptr.vmem [resolvable:$true] %s719
      %722 = dma.vmem_to_hbm [thread:$0]  %s720, 128, %s11, [#allocation3]
    $region53: #{tpu_custom_call.1} parent=1 // pred_fallthru
      _
    // Predicated region
    $region54: #{tpu_custom_call.1} parent=1 // pred_check
      _
    $region55: #{tpu_custom_call.1} parent=1 // pred_check_branch
      %724 = sbr.rel (0) target = $region57
    $region56: #{tpu_custom_call.1} parent=1 // pred_region
      %725 = dma.done [#allocation3], 128
    $region57: #{tpu_custom_call.1} parent=1 // pred_fallthru
      _
    %726 = vsyncpa [#allocation3], 1

// kernel: tpu_custom_call.1
$region0: #{tpu_custom_call.1}
  #allocation0 [shape = 'u32[]', space=smem, size = 0x4, offset = 0x4, fixed_abs, tag = 'smem constant byte address 0x4 - core index']
  #allocation1 [shape = 'u32[144,128]{1,0:T(1,128)}', space=vmem, size = 0x12000, scoped, tag = 'internal scratch']
  %s0 = inlined_call_operand.vmem [shape: s32[8,128], index: 0, kind: input, shape index: {}]
  %s1 = inlined_call_operand.vmem [shape: f32[1,128], index: 1, kind: input, shape index: {}]
  %s2 = inlined_call_operand.vmem [shape: f32[8,128], index: 2, kind: input, shape index: {}]
  %s3 = inlined_call_operand.vmem [shape: s32[128,1], index: 3, kind: input, shape index: {}]
  %s4 = inlined_call_operand.vmem [shape: bf16[32,128], index: 4, kind: input, shape index: {}]
  %s5 = inlined_call_operand.vmem [shape: bf16[32,128], index: 5, kind: input, shape index: {}]
  %s6 = inlined_call_operand.vmem [shape: f32[32,1], index: 6, kind: input, shape index: {}]
  %s7 = inlined_call_operand.vmem [shape: f32[32,1], index: 7, kind: input, shape index: {}]
  %s8 = inlined_call_operand.vmem [shape: bf16[32,32], index: 8, kind: input, shape index: {}]
  %s9 = inlined_call_operand.vmem [shape: f32[32,1], index: 9, kind: input, shape index: {}]
  %s10 = inlined_call_operand.vmem [shape: f32[32,1], index: 10, kind: input, shape index: {}]
  %s11 = inlined_call_operand.hbm [shape: f32[1,8,128], index: 11, kind: output, shape index: {}]
  %s12 = sld [smem:[#allocation0]]
  $region58: #{tpu_custom_call.1} parent=0
    _
  %s14 = ssub.s32 1, %s12
  %s15 = scalar_select 0, %s14, %s12
  $region1: #{tpu_custom_call.1} parent=0
    #allocation2 [shape = 'u8[4096]{0}', space=vmem, size = 0x1000, scoped, tag = 'output window, operand 0, single buffered']
    #allocation3 [shape = 's32[1]{0}', space=sflag, size = 0x4, scoped, tag = 'scoped memory for tpu_custom_call.1']
    %16 = vsyncpa [#allocation3], 0
    // Predicated region
    $region2: #{tpu_custom_call.1} parent=1 // pred_check
      _
    $region3: #{tpu_custom_call.1} parent=1 // pred_check_branch
      %18 = sbr.rel (0) target = $region5
    $region4: #{tpu_custom_call.1} parent=1 // pred_region
      %s19 = sadd.s32 0, 0
      %p20 = scmp.lt.s32.totalorder %s19, 0
      %s21 = scalar_select %p20, %s19, 0
      %s22 = smul.addr %s21, 8
      %s23 = scalar_lea.vmem %s0, %s22
      %s24 = sadd.s32 0, 0
    $region5: #{tpu_custom_call.1} parent=1 // pred_fallthru
      _
    // Predicated region
    $region6: #{tpu_custom_call.1} parent=1 // pred_check
      _
    $region7: #{tpu_custom_call.1} parent=1 // pred_check_branch
      %26 = sbr.rel (0) target = $region9
    $region8: #{tpu_custom_call.1} parent=1 // pred_region
      %s27 = sadd.s32 0, 0
      %p28 = scmp.lt.s32.totalorder %s27, 0
      %s29 = scalar_select %p28, %s27, 0
      %s30 = scalar_lea.vmem %s1, %s29
      %s31 = sadd.s32 0, 0
    $region9: #{tpu_custom_call.1} parent=1 // pred_fallthru
      _
    // Predicated region
    $region10: #{tpu_custom_call.1} parent=1 // pred_check
      _
    $region11: #{tpu_custom_call.1} parent=1 // pred_check_branch
      %33 = sbr.rel (0) target = $region13
    $region12: #{tpu_custom_call.1} parent=1 // pred_region
      %s34 = sadd.s32 0, 0
      %p35 = scmp.lt.s32.totalorder %s34, 0
      %s36 = scalar_select %p35, %s34, 0
      %s37 = smul.addr %s36, 8
      %s38 = scalar_lea.vmem %s2, %s37
      %s39 = sadd.s32 0, 0
    $region13: #{tpu_custom_call.1} parent=1 // pred_fallthru
      _
    // Predicated region
    $region14: #{tpu_custom_call.1} parent=1 // pred_check
      _
    $region15: #{tpu_custom_call.1} parent=1 // pred_check_branch
      %41 = sbr.rel (0) target = $region17
    $region16: #{tpu_custom_call.1} parent=1 // pred_region
      _
    $region17: #{tpu_custom_call.1} parent=1 // pred_fallthru
      _
    // Predicated region
    $region18: #{tpu_custom_call.1} parent=1 // pred_check
      _
    $region19: #{tpu_custom_call.1} parent=1 // pred_check_branch
      %43 = sbr.rel (0) target = $region21
    $region20: #{tpu_custom_call.1} parent=1 // pred_region
      _
    $region21: #{tpu_custom_call.1} parent=1 // pred_fallthru
      _
    // Predicated region
    $region22: #{tpu_custom_call.1} parent=1 // pred_check
      _
    $region23: #{tpu_custom_call.1} parent=1 // pred_check_branch
      %45 = sbr.rel (0) target = $region25
    $region24: #{tpu_custom_call.1} parent=1 // pred_region
      _
    $region25: #{tpu_custom_call.1} parent=1 // pred_fallthru
      _
    // Predicated region
    $region26: #{tpu_custom_call.1} parent=1 // pred_check
      _
    $region27: #{tpu_custom_call.1} parent=1 // pred_check_branch
      %47 = sbr.rel (0) target = $region29
    $region28: #{tpu_custom_call.1} parent=1 // pred_region
      _
    $region29: #{tpu_custom_call.1} parent=1 // pred_fallthru
      _
    // Predicated region
    $region30: #{tpu_custom_call.1} parent=1 // pred_check
      _
    $region31: #{tpu_custom_call.1} parent=1 // pred_check_branch
      %49 = sbr.rel (0) target = $region33
    $region32: #{tpu_custom_call.1} parent=1 // pred_region
      _
    $region33: #{tpu_custom_call.1} parent=1 // pred_fallthru
      _
    // Predicated region
    $region34: #{tpu_custom_call.1} parent=1 // pred_check
      _
    $region35: #{tpu_custom_call.1} parent=1 // pred_check_branch
      %51 = sbr.rel (0) target = $region37
    $region36: #{tpu_custom_call.1} parent=1 // pred_region
      _
    $region37: #{tpu_custom_call.1} parent=1 // pred_fallthru
      _
    // Predicated region
    $region38: #{tpu_custom_call.1} parent=1 // pred_check
      _
    $region39: #{tpu_custom_call.1} parent=1 // pred_check_branch
      %53 = sbr.rel (0) target = $region41
    $region40: #{tpu_custom_call.1} parent=1 // pred_region
      _
    $region41: #{tpu_custom_call.1} parent=1 // pred_fallthru
      _
    // Predicated region
    $region42: #{tpu_custom_call.1} parent=1 // pred_check
      _
    $region43: #{tpu_custom_call.1} parent=1 // pred_check_branch
      %55 = sbr.rel (0) target = $region45
    $region44: #{tpu_custom_call.1} parent=1 // pred_region
      _
    $region45: #{tpu_custom_call.1} parent=1 // pred_fallthru
      _
    %s56 = sadd.s32 0, 0
    %p57 = scmp.lt.s32.totalorder %s56, 0
    %s58 = scalar_select %p57, %s56, 0
    %s59 = smul.addr %s58, 8
    %s60 = scalar_lea.vmem %s0, %s59
    %s61 = sadd.s32 0, 0
    %p62 = scmp.lt.s32.totalorder %s61, 0
    %s63 = scalar_select %p62, %s61, 0
    %s64 = scalar_lea.vmem %s1, %s63
    %s65 = sadd.s32 0, 0
    %p66 = scmp.lt.s32.totalorder %s65, 0
    %s67 = scalar_select %p66, %s65, 0
    %s68 = smul.addr %s67, 8
    %s69 = scalar_lea.vmem %s2, %s68
    %s70 = sadd.s32 0, 0
    %p71 = scmp.lt.s32.totalorder %s70, 0
    %s72 = scalar_select %p71, %s70, 0
    %s73 = smul.addr %s72, 8
    %s74 = scalar_lea.vmem %s0, %s73
    %s75 = sadd.s32 0, 0
    %s76 = sadd.s32 0, 0
    %p77 = scmp.lt.s32.totalorder %s76, 0
    %s78 = scalar_select %p77, %s76, 0
    %s79 = scalar_lea.vmem %s1, %s78
    %s80 = sadd.s32 0, 0
    %s81 = sadd.s32 0, 0
    %p82 = scmp.lt.s32.totalorder %s81, 0
    %s83 = scalar_select %p82, %s81, 0
    %s84 = smul.addr %s83, 8
    %s85 = scalar_lea.vmem %s2, %s84
    %s86 = sadd.s32 0, 0
    %p88 = scmp.eq.s32.totalorder 0, 0
    // Predicated region
    $region46: #{tpu_custom_call.1} parent=1 // pred_check
      %p89 = pneg %p88
    $region47: #{tpu_custom_call.1} parent=1 // pred_check_branch
      %91 = sbr.rel (%p89) target = $region49
    $region48: #{tpu_custom_call.1} parent=1 // pred_region
      %92 = vst [vmem:[#allocation2] sm:$0xff] 0.0
    $region49: #{tpu_custom_call.1} parent=1 // pred_fallthru
      _
    %v93 = vld [vmem:[%s74] sm:$0x1]
    %v94 = vld [vmem:[%s74 + $0x1] sm:$0x1]
    %v95 = vld [vmem:[%s3] sm:$0xff]
    %v96 = vld [vmem:[%s3 + $0x8] sm:$0xff]
    %v97 = vld [vmem:[%s3 + $0x10] sm:$0xff]
    %v98 = vld [vmem:[%s3 + $0x18] sm:$0xff]
    %v99 = vld [vmem:[%s3 + $0x20] sm:$0xff]
    %v100 = vld [vmem:[%s3 + $0x28] sm:$0xff]
    %v101 = vld [vmem:[%s3 + $0x30] sm:$0xff]
    %v102 = vld [vmem:[%s3 + $0x38] sm:$0xff]
    %v103 = vld [vmem:[%s3 + $0x40] sm:$0xff]
    %v104 = vld [vmem:[%s3 + $0x48] sm:$0xff]
    %v105 = vld [vmem:[%s3 + $0x50] sm:$0xff]
    %v106 = vld [vmem:[%s3 + $0x58] sm:$0xff]
    %v107 = vld [vmem:[%s3 + $0x60] sm:$0xff]
    %v108 = vld [vmem:[%s3 + $0x68] sm:$0xff]
    %v109 = vld [vmem:[%s3 + $0x70] sm:$0xff]
    %v110 = vld [vmem:[%s3 + $0x78] sm:$0xff]
    %111 = vset.pattern.permute.xlu0 0
    %112 = vperm.xlu0 %111, %v95
    %v113 = vpop.permute.xlu0 %112
    %114 = vset.pattern.permute.xlu0 0
    %115 = vperm.xlu0 %114, %v96
    %v116 = vpop.permute.xlu0 %115
    %117 = vset.pattern.permute.xlu0 0
    %118 = vperm.xlu0 %117, %v97
    %v119 = vpop.permute.xlu0 %118
    %120 = vset.pattern.permute.xlu0 0
    %121 = vperm.xlu0 %120, %v98
    %v122 = vpop.permute.xlu0 %121
    %123 = vset.pattern.permute.xlu0 0
    %124 = vperm.xlu0 %123, %v99
    %v125 = vpop.permute.xlu0 %124
    %126 = vset.pattern.permute.xlu0 0
    %127 = vperm.xlu0 %126, %v100
    %v128 = vpop.permute.xlu0 %127
    %129 = vset.pattern.permute.xlu0 0
    %130 = vperm.xlu0 %129, %v101
    %v131 = vpop.permute.xlu0 %130
    %132 = vset.pattern.permute.xlu0 0
    %133 = vperm.xlu0 %132, %v102
    %v134 = vpop.permute.xlu0 %133
    %135 = vset.pattern.permute.xlu0 0
    %136 = vperm.xlu0 %135, %v103
    %v137 = vpop.permute.xlu0 %136
    %138 = vset.pattern.permute.xlu0 0
    %139 = vperm.xlu0 %138, %v104
    %v140 = vpop.permute.xlu0 %139
    %141 = vset.pattern.permute.xlu0 0
    %142 = vperm.xlu0 %141, %v105
    %v143 = vpop.permute.xlu0 %142
    %144 = vset.pattern.permute.xlu0 0
    %145 = vperm.xlu0 %144, %v106
    %v146 = vpop.permute.xlu0 %145
    %147 = vset.pattern.permute.xlu0 0
    %148 = vperm.xlu0 %147, %v107
    %v149 = vpop.permute.xlu0 %148
    %150 = vset.pattern.permute.xlu0 0
    %151 = vperm.xlu0 %150, %v108
    %v152 = vpop.permute.xlu0 %151
    %153 = vset.pattern.permute.xlu0 0
    %154 = vperm.xlu0 %153, %v109
    %v155 = vpop.permute.xlu0 %154
    %156 = vset.pattern.permute.xlu0 0
    %157 = vperm.xlu0 %156, %v110
    %v158 = vpop.permute.xlu0 %157
    %v159 = vlaneseq
    %v160 = vshrl.u32 %v159, 7
    %v161 = vsub.s32 0, %v160
    %v162 = vrot.slane %v93, %v161
    %vm163 = vcmp.eq.s32.totalorder %v113, %v162
    %vm164 = vcmp.eq.s32.totalorder %v116, %v162
    %vm165 = vcmp.eq.s32.totalorder %v119, %v162
    %vm166 = vcmp.eq.s32.totalorder %v122, %v162
    %vm167 = vcmp.eq.s32.totalorder %v125, %v162
    %vm168 = vcmp.eq.s32.totalorder %v128, %v162
    %vm169 = vcmp.eq.s32.totalorder %v131, %v162
    %vm170 = vcmp.eq.s32.totalorder %v134, %v162
    %vm171 = vcmp.eq.s32.totalorder %v137, %v162
    %vm172 = vcmp.eq.s32.totalorder %v140, %v162
    %vm173 = vcmp.eq.s32.totalorder %v143, %v162
    %vm174 = vcmp.eq.s32.totalorder %v146, %v162
    %vm175 = vcmp.eq.s32.totalorder %v149, %v162
    %vm176 = vcmp.eq.s32.totalorder %v152, %v162
    %vm177 = vcmp.eq.s32.totalorder %v155, %v162
    %vm178 = vcmp.eq.s32.totalorder %v158, %v162
    %v179 = vsel %vm163, 1, 0
    %v180 = vsel %vm164, 1, 0
    %v181 = vsel %vm165, 1, 0
    %v182 = vsel %vm166, 1, 0
    %v183 = vsel %vm167, 1, 0
    %v184 = vsel %vm168, 1, 0
    %v185 = vsel %vm169, 1, 0
    %v186 = vsel %vm170, 1, 0
    %v187 = vsel %vm171, 1, 0
    %v188 = vsel %vm172, 1, 0
    %v189 = vsel %vm173, 1, 0
    %v190 = vsel %vm174, 1, 0
    %v191 = vsel %vm175, 1, 0
    %v192 = vsel %vm176, 1, 0
    %v193 = vsel %vm177, 1, 0
    %v194 = vsel %vm178, 1, 0
    %v195 = vcvt.s32.f32 %v179
    %v196 = vcvt.s32.f32 %v180
    %v197 = vcvt.s32.f32 %v181
    %v198 = vcvt.s32.f32 %v182
    %v199 = vcvt.s32.f32 %v183
    %v200 = vcvt.s32.f32 %v184
    %v201 = vcvt.s32.f32 %v185
    %v202 = vcvt.s32.f32 %v186
    %v203 = vcvt.s32.f32 %v187
    %v204 = vcvt.s32.f32 %v188
    %v205 = vcvt.s32.f32 %v189
    %v206 = vcvt.s32.f32 %v190
    %v207 = vcvt.s32.f32 %v191
    %v208 = vcvt.s32.f32 %v192
    %v209 = vcvt.s32.f32 %v193
    %v210 = vcvt.s32.f32 %v194
    %v211 = vpack.c.bf16 %v196, %v195
    %v212 = vpack.c.bf16 %v198, %v197
    %v213 = vpack.c.bf16 %v200, %v199
    %v214 = vpack.c.bf16 %v202, %v201
    %v215 = vpack.c.bf16 %v204, %v203
    %v216 = vpack.c.bf16 %v206, %v205
    %v217 = vpack.c.bf16 %v208, %v207
    %v218 = vpack.c.bf16 %v210, %v209
    %v219 = vlaneseq
    %v220 = vshrl.u32 %v219, 7
    %v221 = vsub.s32 0, %v220
    %v222 = vrot.slane %v94, %v221
    %vm223 = vcmp.eq.s32.totalorder %v113, %v222
    %vm224 = vcmp.eq.s32.totalorder %v116, %v222
    %vm225 = vcmp.eq.s32.totalorder %v119, %v222
    %vm226 = vcmp.eq.s32.totalorder %v122, %v222
    %vm227 = vcmp.eq.s32.totalorder %v125, %v222
    %vm228 = vcmp.eq.s32.totalorder %v128, %v222
    %vm229 = vcmp.eq.s32.totalorder %v131, %v222
    %vm230 = vcmp.eq.s32.totalorder %v134, %v222
    %vm231 = vcmp.eq.s32.totalorder %v137, %v222
    %vm232 = vcmp.eq.s32.totalorder %v140, %v222
    %vm233 = vcmp.eq.s32.totalorder %v143, %v222
    %vm234 = vcmp.eq.s32.totalorder %v146, %v222
    %vm235 = vcmp.eq.s32.totalorder %v149, %v222
    %vm236 = vcmp.eq.s32.totalorder %v152, %v222
    %vm237 = vcmp.eq.s32.totalorder %v155, %v222
    %vm238 = vcmp.eq.s32.totalorder %v158, %v222
    %v239 = vsel %vm223, 1, 0
    %v240 = vsel %vm224, 1, 0
    %v241 = vsel %vm225, 1, 0
    %v242 = vsel %vm226, 1, 0
    %v243 = vsel %vm227, 1, 0
    %v244 = vsel %vm228, 1, 0
    %v245 = vsel %vm229, 1, 0
    %v246 = vsel %vm230, 1, 0
    %v247 = vsel %vm231, 1, 0
    %v248 = vsel %vm232, 1, 0
    %v249 = vsel %vm233, 1, 0
    %v250 = vsel %vm234, 1, 0
    %v251 = vsel %vm235, 1, 0
    %v252 = vsel %vm236, 1, 0
    %v253 = vsel %vm237, 1, 0
    %v254 = vsel %vm238, 1, 0
    %v255 = vcvt.s32.f32 %v239
    %v256 = vcvt.s32.f32 %v240
    %v257 = vcvt.s32.f32 %v241
    %v258 = vcvt.s32.f32 %v242
    %v259 = vcvt.s32.f32 %v243
    %v260 = vcvt.s32.f32 %v244
    %v261 = vcvt.s32.f32 %v245
    %v262 = vcvt.s32.f32 %v246
    %v263 = vcvt.s32.f32 %v247
    %v264 = vcvt.s32.f32 %v248
    %v265 = vcvt.s32.f32 %v249
    %v266 = vcvt.s32.f32 %v250
    %v267 = vcvt.s32.f32 %v251
    %v268 = vcvt.s32.f32 %v252
    %v269 = vcvt.s32.f32 %v253
    %v270 = vcvt.s32.f32 %v254
    %v271 = vpack.c.bf16 %v256, %v255
    %v272 = vpack.c.bf16 %v258, %v257
    %v273 = vpack.c.bf16 %v260, %v259
    %v274 = vpack.c.bf16 %v262, %v261
    %v275 = vpack.c.bf16 %v264, %v263
    %v276 = vpack.c.bf16 %v266, %v265
    %v277 = vpack.c.bf16 %v268, %v267
    %v278 = vpack.c.bf16 %v270, %v269
    %v279 = vld [vmem:[%s4] sm:$0xf]
    %v280 = vld [vmem:[%s4 + $0x4] sm:$0xf]
    %v281 = vld [vmem:[%s4 + $0x8] sm:$0xf]
    %v282 = vld [vmem:[%s4 + $0xc] sm:$0xf]
    %v283 = vld [vmem:[%s5] sm:$0xf]
    %v284 = vld [vmem:[%s5 + $0x4] sm:$0xf]
    %v285 = vld [vmem:[%s5 + $0x8] sm:$0xf]
    %v286 = vld [vmem:[%s5 + $0xc] sm:$0xf]
    %v291 = vunpack.c.l.b16 %v283
    %v292 = vunpack.c.l.b16 %v284
    %v293 = vunpack.c.l.b16 %v285
    %v294 = vunpack.c.l.b16 %v286
    %v295 = vpack.c.b16 %v292, %v291
    %v296 = vpack.c.b16 %v294, %v293
    %299 = vmatprep.subr.bf16.mxu0 0
    %300 = vmatpush1.bf16.msra.mxu0 %v278
    %301 = vmatprep.subr.bf16.mxu0 0
    %302 = vmatpush1.bf16.msra.mxu0 %v277
    %303 = vmatprep.subr.bf16.mxu0 0
    %304 = vmatpush1.bf16.msra.mxu0 %v276
    %305 = vmatprep.subr.bf16.mxu0 0
    %306 = vmatpush1.bf16.msra.mxu0 %v275
    %307 = vmatprep.subr.bf16.mxu0 0
    %308 = vmatpush1.bf16.msra.mxu0 %v274
    %309 = vmatprep.subr.bf16.mxu0 0
    %310 = vmatpush1.bf16.msra.mxu0 %v273
    %311 = vmatprep.subr.bf16.mxu0 0
    %312 = vmatpush1.bf16.msra.mxu0 %v272
    %313 = vmatprep.subr.bf16.mxu0 0
    %314 = vmatpush1.bf16.msra.mxu0 %v271
    %315 = vmatprep.subr.bf16.mxu0 0
    %316 = vmatpush2.bf16.msra.mxu0 0
    %317 = vmatprep.subr.bf16.mxu0 0
    %318 = vmatpush2.bf16.msra.mxu0 0
    %319 = vmatprep.subr.bf16.mxu0 0
    %320 = vmatpush2.bf16.msra.mxu0 0
    %321 = vmatprep.subr.bf16.mxu0 0
    %322 = vmatpush2.bf16.msra.mxu0 0
    %323 = vmatprep.subr.bf16.mxu0 0
    %324 = vmatpush2.bf16.msra.mxu0 0
    %325 = vmatprep.subr.bf16.mxu0 0
    %326 = vmatpush2.bf16.msra.mxu0 0
    %327 = vmatprep.subr.bf16.mxu0 0
    %328 = vmatpush2.bf16.msra.mxu0 0
    %329 = vmatprep.subr.bf16.mxu0 0
    %330 = vmatpush2.bf16.msra.mxu0 0
    %331 = vmatprep.mubr.bf16.mxu0 0
    %332 = vmatmul.mubr.bf16.gmra.mxu0 %v295
    %v333 = vpop.f32.mrf.mxu0
    %v334 = vadd.f32 0.0, %v333
    %v335 = vpop.f32.mrf.mxu0
    %v336 = vpop.f32.mrf.mxu0
    %v337 = vadd.f32 0.0, %v336
    %v338 = vpop.f32.mrf.mxu0
    %339 = vmatprep.mubr.bf16.mxu0 0
    %340 = vmatmul.mubr.bf16.gmra.mxu0 %v296
    %v341 = vpop.f32.mrf.mxu0
    %v342 = vadd.f32 0.0, %v341
    %v343 = vpop.f32.mrf.mxu0
    %v344 = vpop.f32.mrf.mxu0
    %v345 = vadd.f32 0.0, %v344
    %v346 = vpop.f32.mrf.mxu0
    %347 = vdwg.mxu0
    %v352 = vunpack.c.l.b16 %v279
    %v353 = vunpack.c.l.b16 %v280
    %v354 = vunpack.c.l.b16 %v281
    %v355 = vunpack.c.l.b16 %v282
    %v356 = vpack.c.b16 %v353, %v352
    %v357 = vpack.c.b16 %v355, %v354
    %360 = vmatprep.subr.bf16.mxu0 0
    %361 = vmatpush1.bf16.msra.mxu0 %v218
    %362 = vmatprep.subr.bf16.mxu0 0
    %363 = vmatpush1.bf16.msra.mxu0 %v217
    %364 = vmatprep.subr.bf16.mxu0 0
    %365 = vmatpush1.bf16.msra.mxu0 %v216
    %366 = vmatprep.subr.bf16.mxu0 0
    %367 = vmatpush1.bf16.msra.mxu0 %v215
    %368 = vmatprep.subr.bf16.mxu0 0
    %369 = vmatpush1.bf16.msra.mxu0 %v214
    %370 = vmatprep.subr.bf16.mxu0 0
    %371 = vmatpush1.bf16.msra.mxu0 %v213
    %372 = vmatprep.subr.bf16.mxu0 0
    %373 = vmatpush1.bf16.msra.mxu0 %v212
    %374 = vmatprep.subr.bf16.mxu0 0
    %375 = vmatpush1.bf16.msra.mxu0 %v211
    %376 = vmatprep.subr.bf16.mxu0 0
    %377 = vmatpush2.bf16.msra.mxu0 0
    %378 = vmatprep.subr.bf16.mxu0 0
    %379 = vmatpush2.bf16.msra.mxu0 0
    %380 = vmatprep.subr.bf16.mxu0 0
    %381 = vmatpush2.bf16.msra.mxu0 0
    %382 = vmatprep.subr.bf16.mxu0 0
    %383 = vmatpush2.bf16.msra.mxu0 0
    %384 = vmatprep.subr.bf16.mxu0 0
    %385 = vmatpush2.bf16.msra.mxu0 0
    %386 = vmatprep.subr.bf16.mxu0 0
    %387 = vmatpush2.bf16.msra.mxu0 0
    %388 = vmatprep.subr.bf16.mxu0 0
    %389 = vmatpush2.bf16.msra.mxu0 0
    %390 = vmatprep.subr.bf16.mxu0 0
    %391 = vmatpush2.bf16.msra.mxu0 0
    %392 = vmatprep.mubr.bf16.mxu0 0
    %393 = vmatmul.mubr.bf16.gmra.mxu0 %v356
    %v394 = vpop.f32.mrf.mxu0
    %v395 = vadd.f32 %v334, %v394
    %v396 = vpop.f32.mrf.mxu0
    %v397 = vpop.f32.mrf.mxu0
    %v398 = vadd.f32 %v337, %v397
    %v399 = vpop.f32.mrf.mxu0
    %400 = vmatprep.mubr.bf16.mxu0 0
    %401 = vmatmul.mubr.bf16.gmra.mxu0 %v357
    %v402 = vpop.f32.mrf.mxu0
    %v403 = vadd.f32 %v342, %v402
    %v404 = vpop.f32.mrf.mxu0
    %v405 = vpop.f32.mrf.mxu0
    %v406 = vadd.f32 %v345, %v405
    %v407 = vpop.f32.mrf.mxu0
    %408 = vdwg.mxu0
    %v409 = vld [vmem:[%s7] sm:$0xff]
    %v410 = vld [vmem:[%s7 + $0x8] sm:$0xff]
    %v411 = vld [vmem:[%s7 + $0x10] sm:$0xff]
    %v412 = vld [vmem:[%s7 + $0x18] sm:$0xff]
    %414 = vset.pattern.permute.xlu0 0
    %415 = vperm.xlu0 %414, %v409
    %v416 = vpop.permute.xlu0 %415
    %419 = vset.pattern.permute.xlu0 0
    %420 = vperm.xlu0 %419, %v410
    %v421 = vpop.permute.xlu0 %420
    %424 = vset.pattern.permute.xlu0 0
    %425 = vperm.xlu0 %424, %v411
    %v426 = vpop.permute.xlu0 %425
    %429 = vset.pattern.permute.xlu0 0
    %430 = vperm.xlu0 %429, %v412
    %v431 = vpop.permute.xlu0 %430
    %v433 = vadd.f32 %v395, %v416
    %v434 = vadd.f32 %v398, %v421
    %v435 = vadd.f32 %v403, %v426
    %v436 = vadd.f32 %v406, %v431
    %v437 = vld [vmem:[%s79] sm:$0x1]
    %v438 = vld [vmem:[%s6] sm:$0xff]
    %v439 = vld [vmem:[%s6 + $0x8] sm:$0xff]
    %v440 = vld [vmem:[%s6 + $0x10] sm:$0xff]
    %v441 = vld [vmem:[%s6 + $0x18] sm:$0xff]
    %443 = vset.pattern.permute.xlu0 0
    %444 = vperm.xlu0 %443, %v438
    %v445 = vpop.permute.xlu0 %444
    %448 = vset.pattern.permute.xlu0 0
    %449 = vperm.xlu0 %448, %v439
    %v450 = vpop.permute.xlu0 %449
    %453 = vset.pattern.permute.xlu0 0
    %454 = vperm.xlu0 %453, %v440
    %v455 = vpop.permute.xlu0 %454
    %458 = vset.pattern.permute.xlu0 0
    %459 = vperm.xlu0 %458, %v441
    %v460 = vpop.permute.xlu0 %459
    %v463 = vlaneseq
    %v464 = vshrl.u32 %v463, 7
    %v465 = vsub.s32 0, %v464
    %v466 = vrot.slane %v437, %v465
    %v468 = vmul.f32 %v445, %v466
    %v469 = vmul.f32 %v450, %v466
    %v470 = vmul.f32 %v455, %v466
    %v471 = vmul.f32 %v460, %v466
    %v472 = vadd.f32 %v433, %v468
    %v473 = vadd.f32 %v434, %v469
    %v474 = vadd.f32 %v435, %v470
    %v475 = vadd.f32 %v436, %v471
    %v476 = vxor.u32 %v472, 2147483648
    %v477 = vxor.u32 %v473, 2147483648
    %v478 = vxor.u32 %v474, 2147483648
    %v479 = vxor.u32 %v475, 2147483648
    %v480 = vmul.f32 %v476, 1.442695
    %v481 = vpow.pop %v480
    %v482 = vmul.f32 %v477, 1.442695
    %v483 = vpow.pop %v482
    %v484 = vmul.f32 %v478, 1.442695
    %v485 = vpow.pop %v484
    %v486 = vmul.f32 %v479, 1.442695
    %v487 = vpow.pop %v486
    %v488 = vadd.f32 %v481, 1.0
    %v489 = vadd.f32 %v483, 1.0
    %v490 = vadd.f32 %v485, 1.0
    %v491 = vadd.f32 %v487, 1.0
    %v492 = vrcp.pop %v488
    %v493 = vmul.f32 1.0, %v492
    %v494 = vrcp.pop %v489
    %v495 = vmul.f32 1.0, %v494
    %v496 = vrcp.pop %v490
    %v497 = vmul.f32 1.0, %v496
    %v498 = vrcp.pop %v491
    %v499 = vmul.f32 1.0, %v498
    %v500 = vmul.f32 %v472, %v493
    %v501 = vmul.f32 %v473, %v495
    %v502 = vmul.f32 %v474, %v497
    %v503 = vmul.f32 %v475, %v499
    %v504 = vld [vmem:[%s8] sm:$0xf]
    %v505 = vld [vmem:[%s8 + $0x4] sm:$0xf]
    %v506 = vld [vmem:[%s8 + $0x8] sm:$0xf]
    %v507 = vld [vmem:[%s8 + $0xc] sm:$0xf]
    %v508 = vpack.c.bf16 %v501, %v500
    %v509 = vpack.c.bf16 %v503, %v502
    %v510 = vld [vmem:[%s9] sm:$0xff]
    %v511 = vld [vmem:[%s9 + $0x8] sm:$0xff]
    %v512 = vld [vmem:[%s9 + $0x10] sm:$0xff]
    %v513 = vld [vmem:[%s9 + $0x18] sm:$0xff]
    %515 = vset.pattern.permute.xlu0 0
    %516 = vperm.xlu0 %515, %v510
    %v517 = vpop.permute.xlu0 %516
    %520 = vset.pattern.permute.xlu0 0
    %521 = vperm.xlu0 %520, %v511
    %v522 = vpop.permute.xlu0 %521
    %525 = vset.pattern.permute.xlu0 0
    %526 = vperm.xlu0 %525, %v512
    %v527 = vpop.permute.xlu0 %526
    %530 = vset.pattern.permute.xlu0 0
    %531 = vperm.xlu0 %530, %v513
    %v532 = vpop.permute.xlu0 %531
    %v538 = vunpack.c.l.b16 %v504
    %v539 = vunpack.c.l.b16 %v505
    %v540 = vunpack.c.l.b16 %v506
    %v541 = vunpack.c.l.b16 %v507
    %v542 = vpack.c.b16 %v539, %v538
    %v543 = vpack.c.b16 %v541, %v540
    %vm544 = vcmask 261120
    %v546 = vsel %vm544, %v542, 0
    %v549 = vsel %vm544, %v543, 0
    %551 = vmatprep.subr.bf16.mxu0 0
    %552 = vmatpush1.bf16.msra.mxu0 0
    %553 = vmatprep.subr.bf16.mxu0 0
    %554 = vmatpush1.bf16.msra.mxu0 0
    %555 = vmatprep.subr.bf16.mxu0 0
    %556 = vmatpush1.bf16.msra.mxu0 0
    %557 = vmatprep.subr.bf16.mxu0 0
    %558 = vmatpush1.bf16.msra.mxu0 0
    %559 = vmatprep.subr.bf16.mxu0 0
    %560 = vmatpush1.bf16.msra.mxu0 0
    %561 = vmatprep.subr.bf16.mxu0 0
    %562 = vmatpush1.bf16.msra.mxu0 0
    %563 = vmatprep.subr.bf16.mxu0 0
    %564 = vmatpush1.bf16.msra.mxu0 %v509
    %565 = vmatprep.subr.bf16.mxu0 0
    %566 = vmatpush1.bf16.msra.mxu0 %v508
    %567 = vmatprep.subr.bf16.mxu0 0
    %568 = vmatpush2.bf16.msra.mxu0 0
    %569 = vmatprep.subr.bf16.mxu0 0
    %570 = vmatpush2.bf16.msra.mxu0 0
    %571 = vmatprep.subr.bf16.mxu0 0
    %572 = vmatpush2.bf16.msra.mxu0 0
    %573 = vmatprep.subr.bf16.mxu0 0
    %574 = vmatpush2.bf16.msra.mxu0 0
    %575 = vmatprep.subr.bf16.mxu0 0
    %576 = vmatpush2.bf16.msra.mxu0 0
    %577 = vmatprep.subr.bf16.mxu0 0
    %578 = vmatpush2.bf16.msra.mxu0 0
    %579 = vmatprep.subr.bf16.mxu0 0
    %580 = vmatpush2.bf16.msra.mxu0 0
    %581 = vmatprep.subr.bf16.mxu0 0
    %582 = vmatpush2.bf16.msra.mxu0 0
    %583 = vmatprep.mubr.bf16.mxu0 0
    %584 = vmatmul.mubr.bf16.gmra.mxu0 %v546
    %v585 = vpop.f32.mrf.mxu0
    %v586 = vadd.f32 %v517, %v585
    %v587 = vpop.f32.mrf.mxu0
    %v588 = vpop.f32.mrf.mxu0
    %v589 = vadd.f32 %v522, %v588
    %v590 = vpop.f32.mrf.mxu0
    %591 = vmatprep.mubr.bf16.mxu0 0
    %592 = vmatmul.mubr.bf16.gmra.mxu0 %v549
    %v593 = vpop.f32.mrf.mxu0
    %v594 = vadd.f32 %v527, %v593
    %v595 = vpop.f32.mrf.mxu0
    %v596 = vpop.f32.mrf.mxu0
    %v597 = vadd.f32 %v532, %v596
    %v598 = vpop.f32.mrf.mxu0
    %599 = vdwg.mxu0
    %v600 = vxor.u32 %v586, 2147483648
    %v601 = vxor.u32 %v589, 2147483648
    %v602 = vxor.u32 %v594, 2147483648
    %v603 = vxor.u32 %v597, 2147483648
    %v604 = vmul.f32 %v600, 1.442695
    %v605 = vpow.pop %v604
    %v606 = vmul.f32 %v601, 1.442695
    %v607 = vpow.pop %v606
    %v608 = vmul.f32 %v602, 1.442695
    %v609 = vpow.pop %v608
    %v610 = vmul.f32 %v603, 1.442695
    %v611 = vpow.pop %v610
    %v612 = vadd.f32 %v605, 1.0
    %v613 = vadd.f32 %v607, 1.0
    %v614 = vadd.f32 %v609, 1.0
    %v615 = vadd.f32 %v611, 1.0
    %v616 = vrcp.pop %v612
    %v617 = vmul.f32 1.0, %v616
    %v618 = vrcp.pop %v613
    %v619 = vmul.f32 1.0, %v618
    %v620 = vrcp.pop %v614
    %v621 = vmul.f32 1.0, %v620
    %v622 = vrcp.pop %v615
    %v623 = vmul.f32 1.0, %v622
    %v624 = vmul.f32 %v586, %v617
    %v625 = vmul.f32 %v589, %v619
    %v626 = vmul.f32 %v594, %v621
    %v627 = vmul.f32 %v597, %v623
    %v628 = vld [vmem:[%s10] sm:$0xff]
    %v629 = vld [vmem:[%s10 + $0x8] sm:$0xff]
    %v630 = vld [vmem:[%s10 + $0x10] sm:$0xff]
    %v631 = vld [vmem:[%s10 + $0x18] sm:$0xff]
    %633 = vset.pattern.permute.xlu0 0
    %634 = vperm.xlu0 %633, %v628
    %v635 = vpop.permute.xlu0 %634
    %638 = vset.pattern.permute.xlu0 0
    %639 = vperm.xlu0 %638, %v629
    %v640 = vpop.permute.xlu0 %639
    %643 = vset.pattern.permute.xlu0 0
    %644 = vperm.xlu0 %643, %v630
    %v645 = vpop.permute.xlu0 %644
    %648 = vset.pattern.permute.xlu0 0
    %649 = vperm.xlu0 %648, %v631
    %v650 = vpop.permute.xlu0 %649
    %v652 = vmul.f32 %v624, %v635
    %v653 = vmul.f32 %v625, %v640
    %v654 = vmul.f32 %v626, %v645
    %v655 = vmul.f32 %v627, %v650
    %v656 = vadd.f32 %v652, %v653
    %v657 = vadd.f32 %v656, %v654
    %v658 = vadd.f32 %v657, %v655
    %v659 = vrot.slane %v658, 4
    %v660 = vadd.f32 %v658, %v659
    %v661 = vrot.slane %v660, 2
    %v662 = vadd.f32 %v660, %v661
    %v663 = vrot.slane %v662, 1
    %v664 = vadd.f32 %v662, %v663
    %v665 = vtanh.pop %v664
    %v666 = vmul.f32 %v665, 10.0
    %v667 = vld [vmem:[%s85] sm:$0xff]
    %v668 = vmul.f32 %v667, %v666
    %v669 = vpack.c.bf16 %v668, %v668
    %v670 = vld [vmem:[#allocation2] sm:$0xff]
    %671 = vmatprep.subr.bf16.mxu0 0
    %672 = vmatpush1.bf16.xpose.msra.mxu0 %v218
    %673 = vmatprep.subr.bf16.mxu0 0
    %674 = vmatpush1.bf16.xpose.msra.mxu0 %v217
    %675 = vmatprep.subr.bf16.mxu0 0
    %676 = vmatpush1.bf16.xpose.msra.mxu0 %v216
    %677 = vmatprep.subr.bf16.mxu0 0
    %678 = vmatpush1.bf16.xpose.msra.mxu0 %v215
    %679 = vmatprep.subr.bf16.mxu0 0
    %680 = vmatpush1.bf16.xpose.msra.mxu0 %v214
    %681 = vmatprep.subr.bf16.mxu0 0
    %682 = vmatpush1.bf16.xpose.msra.mxu0 %v213
    %683 = vmatprep.subr.bf16.mxu0 0
    %684 = vmatpush1.bf16.xpose.msra.mxu0 %v212
    %685 = vmatprep.subr.bf16.mxu0 0
    %686 = vmatpush1.bf16.xpose.msra.mxu0 %v211
    %687 = vmatprep.subr.bf16.mxu0 0
    %688 = vmatpush2.bf16.xpose.msra.mxu0 0
    %689 = vmatprep.subr.bf16.mxu0 0
    %690 = vmatpush2.bf16.xpose.msra.mxu0 0
    %691 = vmatprep.subr.bf16.mxu0 0
    %692 = vmatpush2.bf16.xpose.msra.mxu0 0
    %693 = vmatprep.subr.bf16.mxu0 0
    %694 = vmatpush2.bf16.xpose.msra.mxu0 0
    %695 = vmatprep.subr.bf16.mxu0 0
    %696 = vmatpush2.bf16.xpose.msra.mxu0 0
    %697 = vmatprep.subr.bf16.mxu0 0
    %698 = vmatpush2.bf16.xpose.msra.mxu0 0
    %699 = vmatprep.subr.bf16.mxu0 0
    %700 = vmatpush2.bf16.xpose.msra.mxu0 0
    %701 = vmatprep.subr.bf16.mxu0 0
    %702 = vmatpush2.bf16.xpose.msra.mxu0 0
    %703 = vmatprep.mubr.bf16.mxu0 0
    %704 = vmatmul.mubr.bf16.gmra.mxu0 %v669
    %v705 = vpop.f32.mrf.mxu0
    %v706 = vadd.f32 0.0, %v705
    %v707 = vpop.f32.mrf.mxu0
    %v708 = vpop.f32.mrf.mxu0
    %v709 = vpop.f32.mrf.mxu0
    %710 = vdwg.mxu0
    %v711 = vadd.f32 %v670, %v706
    %712 = vst [vmem:[#allocation2] sm:$0xff] %v711
    // Predicated region
    $region50: #{tpu_custom_call.1} parent=1 // pred_check
      _
    $region51: #{tpu_custom_call.1} parent=1 // pred_check_branch
      %714 = sbr.rel (0) target = $region53
    $region52: #{tpu_custom_call.1} parent=1 // pred_region
      %s716 = ssub.s32 128, 128
      %717 = vsyncadd [#allocation3], %s716
      %s719 = sshll.u32 [#allocation2], 4
      %s720 = int_to_ptr.vmem [resolvable:$true] %s719
      %722 = dma.vmem_to_hbm [thread:$0]  %s720, 128, %s11, [#allocation3]
    $region53: #{tpu_custom_call.1} parent=1 // pred_fallthru
      _
    // Predicated region
    $region54: #{tpu_custom_call.1} parent=1 // pred_check
      _
    $region55: #{tpu_custom_call.1} parent=1 // pred_check_branch
      %724 = sbr.rel (0) target = $region57
    $region56: #{tpu_custom_call.1} parent=1 // pred_region
      %725 = dma.done [#allocation3], 128
    $region57: #{tpu_custom_call.1} parent=1 // pred_fallthru
      _
    %726 = vsyncpa [#allocation3], 1

</llo_original>
